<compile_context>
chip_gen: v5e
topology: v5e:2x2
jax: 0.10.0
libtpu: 0.0.40
codegen_flags: <defaults>
</compile_context>

<pallas_src>
import functools

import jax
import jax.numpy as jnp
from jax.experimental import pallas as pl
from jax.experimental.pallas import tpu as pltpu

C_PAD = 128  # lane-dense channel padding


def _fused_sage_kernel(adj_ref, x_ref, w_ref, b_ref, alpha_ref, out_ref, *, num_layers):
    """All SAGE layers fused, everything resident in VMEM.

    adj_ref   : (N, N)             bf16 dense adjacency (0/1, exact in bf16)
    x_ref     : (N, C_PAD)         f32 node features (zero-padded channels)
    w_ref     : (L, 2*C_PAD, C_PAD) f32 stacked [Wl; Wr] per layer (zero-padded)
    b_ref     : (L, 1, C_PAD)      f32 bias per layer (zero-padded)
    alpha_ref : (L,)               f32 SMEM PReLU slopes (last entry unused)
    out_ref   : (L, N, C_PAD)      f32; rows 0..L-2 = post-PReLU structures,
                                        row  L-1    = final layer output
    """
    # --- one-time adjacency normalization (mean aggregation) ---
    adj = adj_ref[...].astype(jnp.float32)                            # exact upcast of 0/1
    deg = jnp.sum(adj, axis=-1, keepdims=True)                        # (N, 1), integer-valued
    deg_inv = jnp.where(deg > 0, 1.0 / jnp.maximum(deg, 1.0), 0.0)    # exact, done once
    adj_norm = adj * deg_inv                                          # row-normalized, reused by all layers

    x = x_ref[...]                                                    # (N, C_PAD)
    for l in range(num_layers):
        agg = jnp.dot(adj_norm, x, preferred_element_type=jnp.float32)          # (N, C_PAD)
        cat = jnp.concatenate([agg, x], axis=-1)                                 # (N, 2*C_PAD)
        h = jnp.dot(cat, w_ref[l], preferred_element_type=jnp.float32) + b_ref[l]
        if l < num_layers - 1:
            a = alpha_ref[l]
            h = jnp.where(h > 0, h, a * h)        # PReLU; dropout = identity in eval mode
        out_ref[l] = h.astype(out_ref.dtype)      # lane-dense (C_PAD=128) store
        x = h


def init_sage_params(key, in_channels, hidden_channels, out_channels, num_layers):
    """Deterministic parameter init matching the module's layer shapes."""
    dims = [in_channels] + [hidden_channels] * (num_layers - 1) + [out_channels]
    params = []
    for i in range(num_layers):
        cin, cout = dims[i], dims[i + 1]
        key, k1, k2 = jax.random.split(key, 3)
        scale = 1.0 / jnp.sqrt(jnp.float32(cin))
        wl = jax.random.uniform(k1, (cin, cout), jnp.float32, -scale, scale)
        wr = jax.random.uniform(k2, (cin, cout), jnp.float32, -scale, scale)
        b = jnp.zeros((cout,), jnp.float32)
        alpha = jnp.full((1,), 0.25, jnp.float32)   # torch PReLU default init
        params.append((wl, wr, b, alpha))
    return params


def sage_forward(x, adj, params):
    """Forward pass of SAGE (inference mode). Returns (x_out, structures)."""
    n, c_in = x.shape
    num_layers = len(params)
    hidden = params[0][0].shape[1]
    c_out = params[-1][0].shape[1]

    # ---- host-side packing (padding to lane-dense 128 channels, weight stacking) ----
    x_p = jnp.zeros((n, C_PAD), jnp.float32).at[:, :c_in].set(x)

    w_stack, b_stack, alphas = [], [], []
    for (wl, wr, b, alpha) in params:
        ci, co = wl.shape
        w_cat = jnp.zeros((2 * C_PAD, C_PAD), jnp.float32)
        w_cat = w_cat.at[:ci, :co].set(wl)                    # neighbor/aggregate weight
        w_cat = w_cat.at[C_PAD:C_PAD + ci, :co].set(wr)       # root/self weight
        w_stack.append(w_cat)
        b_stack.append(jnp.zeros((1, C_PAD), jnp.float32).at[0, :co].set(b))
        alphas.append(alpha[0])
    w_stack = jnp.stack(w_stack)          # (L, 2*C_PAD, C_PAD)
    b_stack = jnp.stack(b_stack)          # (L, 1, C_PAD)
    alphas = jnp.stack(alphas)            # (L,)

    adj_bf16 = adj.astype(jnp.bfloat16)   # 0/1 adjacency is exact in bf16; halves DMA/VMEM

    kernel = functools.partial(_fused_sage_kernel, num_layers=num_layers)
    cost = pl.CostEstimate(
        flops=num_layers * (2 * n * n * C_PAD + 2 * n * (2 * C_PAD) * C_PAD),
        transcendentals=0,
        bytes_accessed=(adj_bf16.size * 2 + x_p.size * 4 + w_stack.size * 4
                        + b_stack.size * 4 + num_layers * n * C_PAD * 4),
    )
    vmem = pl.BlockSpec(memory_space=pltpu.MemorySpace.VMEM)
    smem = pl.BlockSpec(memory_space=pltpu.MemorySpace.SMEM)

    stacked = pl.pallas_call(
        kernel,
        out_shape=jax.ShapeDtypeStruct((num_layers, n, C_PAD), jnp.float32),
        in_specs=[vmem, vmem, vmem, vmem, smem],
        out_specs=vmem,
        cost_estimate=cost,
    )(adj_bf16, x_p, w_stack, b_stack, alphas)

    structures = [stacked[l, :, :hidden] for l in range(num_layers - 1)]
    out = stacked[num_layers - 1, :, :c_out]
    return out, structures


if __name__ == "__main__":
    # Small, module-consistent shapes
    N = 128                # number of graph nodes
    in_channels = 32
    hidden_channels = 32
    out_channels = 16
    num_layers = 3
    dropout = 0.5          # inference mode -> identity

    key = jax.random.PRNGKey(0)
    key, kx, ka = jax.random.split(key, 3)

    x = jax.random.normal(kx, (N, in_channels), jnp.float32)
    # random sparse-ish binary dense adjacency (~8 neighbors per node)
    adj = (jax.random.uniform(ka, (N, N)) < (8.0 / N)).astype(jnp.float32)

    params = init_sage_params(key, in_channels, hidden_channels, out_channels, num_layers)

    out, structures = sage_forward(x, adj, params)
    out = jax.block_until_ready(out)
    for s in structures:
        jax.block_until_ready(s)

    assert out.shape == (N, out_channels)
    assert len(structures) == num_layers - 1
    assert all(s.shape == (N, hidden_channels) for s in structures)

    print("KERNEL_OK")
</pallas_src>

<mosaic_0001>
module attributes {stable_mosaic.version = 11 : i64} {
  func.func @_fused_sage_kernel(%arg0: memref<128x128xbf16, #tpu.memory_space<vmem>>, %arg1: memref<128x128xf32, #tpu.memory_space<vmem>>, %arg2: memref<3x256x128xf32, #tpu.memory_space<vmem>>, %arg3: memref<3x1x128xf32, #tpu.memory_space<vmem>>, %arg4: memref<3xf32, #tpu.memory_space<smem>>, %arg5: memref<3x128x128xf32, #tpu.memory_space<vmem>>) attributes {dimension_semantics = [], scalar_prefetch = 0 : i64, scratch_operands = 0 : i64, tpu.core_type = #tpu.core_type<tc>} {
    %c0 = arith.constant 0 : index
    %c0_0 = arith.constant 0 : index
    %0 = vector.load %arg0[%c0, %c0_0] : memref<128x128xbf16, #tpu.memory_space<vmem>>, vector<128x128xbf16>
    %1 = arith.extf %0 : vector<128x128xbf16> to vector<128x128xf32>
    %cst = arith.constant dense<0.000000e+00> : vector<128xf32>
    %2 = vector.multi_reduction <add>, %1, %cst [1] : vector<128x128xf32> to vector<128xf32>
    %3 = vector.shape_cast %2 : vector<128xf32> to vector<128x1xf32>
    %cst_1 = arith.constant 0.000000e+00 : f32
    %4 = vector.broadcast %cst_1 : f32 to vector<128x1xf32>
    %5 = arith.cmpf ogt, %3, %4 : vector<128x1xf32>
    %cst_2 = arith.constant 1.000000e+00 : f32
    %6 = vector.broadcast %cst_2 : f32 to vector<128x1xf32>
    %7 = arith.maximumf %3, %6 : vector<128x1xf32>
    %cst_3 = arith.constant 1.000000e+00 : f32
    %8 = vector.broadcast %cst_3 : f32 to vector<128x1xf32>
    %9 = arith.divf %8, %7 : vector<128x1xf32>
    %cst_4 = arith.constant 0.000000e+00 : f32
    %10 = vector.broadcast %cst_4 : f32 to vector<128x1xf32>
    %11 = arith.select %5, %9, %10 : vector<128x1xi1>, vector<128x1xf32>
    %12 = vector.broadcast %11 : vector<128x1xf32> to vector<128x128xf32>
    %13 = arith.mulf %1, %12 : vector<128x128xf32>
    %c0_5 = arith.constant 0 : index
    %c0_6 = arith.constant 0 : index
    %14 = vector.load %arg1[%c0_5, %c0_6] : memref<128x128xf32, #tpu.memory_space<vmem>>, vector<128x128xf32>
    %cst_7 = arith.constant dense<0.000000e+00> : vector<128x128xf32>
    %15 = tpu.matmul %13, %14, %cst_7 {dimension_numbers = #tpu.dot_dimension_numbers<[1], [0], [0], [1], [0, 0, 1, 1], [], []>} : vector<128x128xf32>, vector<128x128xf32>, vector<128x128xf32> -> vector<128x128xf32>
    %16 = tpu.concatenate %15, %14 in 1 : vector<128x128xf32>, vector<128x128xf32> -> vector<128x256xf32>
    %c0_8 = arith.constant 0 : index
    %c0_9 = arith.constant 0 : index
    %c0_10 = arith.constant 0 : index
    %17 = vector.load %arg2[%c0_8, %c0_9, %c0_10] : memref<3x256x128xf32, #tpu.memory_space<vmem>>, vector<1x256x128xf32>
    %18 = vector.shape_cast %17 : vector<1x256x128xf32> to vector<256x128xf32>
    %cst_11 = arith.constant dense<0.000000e+00> : vector<128x128xf32>
    %19 = tpu.matmul %16, %18, %cst_11 {dimension_numbers = #tpu.dot_dimension_numbers<[1], [0], [0], [1], [0, 0, 1, 1], [], []>} : vector<128x256xf32>, vector<256x128xf32>, vector<128x128xf32> -> vector<128x128xf32>
    %c0_12 = arith.constant 0 : index
    %c0_13 = arith.constant 0 : index
    %c0_14 = arith.constant 0 : index
    %20 = vector.load %arg3[%c0_12, %c0_13, %c0_14] : memref<3x1x128xf32, #tpu.memory_space<vmem>>, vector<1x1x128xf32>
    %21 = vector.shape_cast %20 : vector<1x1x128xf32> to vector<1x128xf32>
    %22 = vector.broadcast %21 : vector<1x128xf32> to vector<128x128xf32>
    %23 = arith.addf %19, %22 : vector<128x128xf32>
    %c0_15 = arith.constant 0 : index
    %24 = memref.load %arg4[%c0_15] : memref<3xf32, #tpu.memory_space<smem>>
    %cst_16 = arith.constant 0.000000e+00 : f32
    %25 = vector.broadcast %cst_16 : f32 to vector<128x128xf32>
    %26 = arith.cmpf ogt, %23, %25 : vector<128x128xf32>
    %27 = vector.broadcast %24 : f32 to vector<128x128xf32>
    %28 = arith.mulf %27, %23 : vector<128x128xf32>
    %29 = arith.select %26, %23, %28 : vector<128x128xi1>, vector<128x128xf32>
    %c0_17 = arith.constant 0 : index
    %c0_18 = arith.constant 0 : index
    %c0_19 = arith.constant 0 : index
    %30 = vector.load %arg5[%c0_17, %c0_18, %c0_19] : memref<3x128x128xf32, #tpu.memory_space<vmem>>, vector<1x128x128xf32>
    %31 = vector.shape_cast %30 : vector<1x128x128xf32> to vector<128x128xf32>
    %32 = vector.shape_cast %29 : vector<128x128xf32> to vector<1x128x128xf32>
    tpu.vector_store %arg5[%c0_17, %c0_18, %c0_19], %32 {strides = array<i32>} : memref<3x128x128xf32, #tpu.memory_space<vmem>>, vector<1x128x128xf32>,
    %cst_20 = arith.constant dense<0.000000e+00> : vector<128x128xf32>
    %33 = tpu.matmul %13, %29, %cst_20 {dimension_numbers = #tpu.dot_dimension_numbers<[1], [0], [0], [1], [0, 0, 1, 1], [], []>} : vector<128x128xf32>, vector<128x128xf32>, vector<128x128xf32> -> vector<128x128xf32>
    %34 = tpu.concatenate %33, %29 in 1 : vector<128x128xf32>, vector<128x128xf32> -> vector<128x256xf32>
    %c1 = arith.constant 1 : index
    %c0_21 = arith.constant 0 : index
    %c0_22 = arith.constant 0 : index
    %35 = vector.load %arg2[%c1, %c0_21, %c0_22] : memref<3x256x128xf32, #tpu.memory_space<vmem>>, vector<1x256x128xf32>
    %36 = vector.shape_cast %35 : vector<1x256x128xf32> to vector<256x128xf32>
    %cst_23 = arith.constant dense<0.000000e+00> : vector<128x128xf32>
    %37 = tpu.matmul %34, %36, %cst_23 {dimension_numbers = #tpu.dot_dimension_numbers<[1], [0], [0], [1], [0, 0, 1, 1], [], []>} : vector<128x256xf32>, vector<256x128xf32>, vector<128x128xf32> -> vector<128x128xf32>
    %c1_24 = arith.constant 1 : index
    %c0_25 = arith.constant 0 : index
    %c0_26 = arith.constant 0 : index
    %38 = vector.load %arg3[%c1_24, %c0_25, %c0_26] : memref<3x1x128xf32, #tpu.memory_space<vmem>>, vector<1x1x128xf32>
    %39 = vector.shape_cast %38 : vector<1x1x128xf32> to vector<1x128xf32>
    %40 = vector.broadcast %39 : vector<1x128xf32> to vector<128x128xf32>
    %41 = arith.addf %37, %40 : vector<128x128xf32>
    %c1_27 = arith.constant 1 : index
    %42 = memref.load %arg4[%c1_27] : memref<3xf32, #tpu.memory_space<smem>>
    %cst_28 = arith.constant 0.000000e+00 : f32
    %43 = vector.broadcast %cst_28 : f32 to vector<128x128xf32>
    %44 = arith.cmpf ogt, %41, %43 : vector<128x128xf32>
    %45 = vector.broadcast %42 : f32 to vector<128x128xf32>
    %46 = arith.mulf %45, %41 : vector<128x128xf32>
    %47 = arith.select %44, %41, %46 : vector<128x128xi1>, vector<128x128xf32>
    %c1_29 = arith.constant 1 : index
    %c0_30 = arith.constant 0 : index
    %c0_31 = arith.constant 0 : index
    %48 = vector.load %arg5[%c1_29, %c0_30, %c0_31] : memref<3x128x128xf32, #tpu.memory_space<vmem>>, vector<1x128x128xf32>
    %49 = vector.shape_cast %48 : vector<1x128x128xf32> to vector<128x128xf32>
    %50 = vector.shape_cast %47 : vector<128x128xf32> to vector<1x128x128xf32>
    tpu.vector_store %arg5[%c1_29, %c0_30, %c0_31], %50 {strides = array<i32>} : memref<3x128x128xf32, #tpu.memory_space<vmem>>, vector<1x128x128xf32>,
    %cst_32 = arith.constant dense<0.000000e+00> : vector<128x128xf32>
    %51 = tpu.matmul %13, %47, %cst_32 {dimension_numbers = #tpu.dot_dimension_numbers<[1], [0], [0], [1], [0, 0, 1, 1], [], []>} : vector<128x128xf32>, vector<128x128xf32>, vector<128x128xf32> -> vector<128x128xf32>
    %52 = tpu.concatenate %51, %47 in 1 : vector<128x128xf32>, vector<128x128xf32> -> vector<128x256xf32>
    %c2 = arith.constant 2 : index
    %c0_33 = arith.constant 0 : index
    %c0_34 = arith.constant 0 : index
    %53 = vector.load %arg2[%c2, %c0_33, %c0_34] : memref<3x256x128xf32, #tpu.memory_space<vmem>>, vector<1x256x128xf32>
    %54 = vector.shape_cast %53 : vector<1x256x128xf32> to vector<256x128xf32>
    %cst_35 = arith.constant dense<0.000000e+00> : vector<128x128xf32>
    %55 = tpu.matmul %52, %54, %cst_35 {dimension_numbers = #tpu.dot_dimension_numbers<[1], [0], [0], [1], [0, 0, 1, 1], [], []>} : vector<128x256xf32>, vector<256x128xf32>, vector<128x128xf32> -> vector<128x128xf32>
    %c2_36 = arith.constant 2 : index
    %c0_37 = arith.constant 0 : index
    %c0_38 = arith.constant 0 : index
    %56 = vector.load %arg3[%c2_36, %c0_37, %c0_38] : memref<3x1x128xf32, #tpu.memory_space<vmem>>, vector<1x1x128xf32>
    %57 = vector.shape_cast %56 : vector<1x1x128xf32> to vector<1x128xf32>
    %58 = vector.broadcast %57 : vector<1x128xf32> to vector<128x128xf32>
    %59 = arith.addf %55, %58 : vector<128x128xf32>
    %c2_39 = arith.constant 2 : index
    %c0_40 = arith.constant 0 : index
    %c0_41 = arith.constant 0 : index
    %60 = vector.load %arg5[%c2_39, %c0_40, %c0_41] : memref<3x128x128xf32, #tpu.memory_space<vmem>>, vector<1x128x128xf32>
    %61 = vector.shape_cast %60 : vector<1x128x128xf32> to vector<128x128xf32>
    %62 = vector.shape_cast %59 : vector<128x128xf32> to vector<1x128x128xf32>
    tpu.vector_store %arg5[%c2_39, %c0_40, %c0_41], %62 {strides = array<i32>} : memref<3x128x128xf32, #tpu.memory_space<vmem>>, vector<1x128x128xf32>,
    return
  }
}

</mosaic_0001>

<llo_original>
// kernel: tpu_custom_call.1
$region0: #{tpu_custom_call.1}
  #allocation0 [shape = 'u32[]', space=smem, size = 0x4, offset = 0x4, fixed_abs, tag = 'smem constant byte address 0x4 - core index']
  #allocation1 [shape = 'u32[72,128]{1,0:T(1,128)}', space=vmem, size = 0x9000, scoped, tag = 'internal scratch']
  %s0 = inlined_call_operand.hbm [shape: bf16[128,128], index: 0, kind: input, shape index: {}]
  %s1 = inlined_call_operand.hbm [shape: f32[128,128], index: 1, kind: input, shape index: {}]
  %s2 = inlined_call_operand.hbm [shape: f32[3,256,128], index: 2, kind: input, shape index: {}]
  %s3 = inlined_call_operand.hbm [shape: f32[3,1,128], index: 3, kind: input, shape index: {}]
  %s4 = inlined_call_operand.vmem [shape: f32[3], index: 4, kind: input, shape index: {}]
  %s5 = inlined_call_operand.hbm [shape: f32[3,128,128], index: 5, kind: output, shape index: {}]
  %s6 = sld [smem:[#allocation0]]
  $region50: #{tpu_custom_call.1} parent=0
    _
  %s8 = ssub.s32 1, %s6
  %s9 = scalar_select 0, %s8, %s6
  $region1: #{tpu_custom_call.1} parent=0
    #allocation2 [shape = 'u8[32768]{0}', space=vmem, size = 0x8000, scoped, tag = 'input window, operand 0, single buffered']
    #allocation3 [shape = 's32[1]{0}', space=sflag, size = 0x4, scoped, tag = 'scoped memory for tpu_custom_call.1']
    #allocation4 [shape = 's32[1]{0}', space=sflag, size = 0x4, scoped, tag = 'scoped memory for tpu_custom_call.1']
    #allocation5 [shape = 's32[1]{0}', space=sflag, size = 0x4, scoped, tag = 'scoped memory for tpu_custom_call.1']
    #allocation6 [shape = 'u8[65536]{0}', space=vmem, size = 0x10000, scoped, tag = 'input window, operand 1, single buffered']
    #allocation7 [shape = 's32[1]{0}', space=sflag, size = 0x4, scoped, tag = 'scoped memory for tpu_custom_call.1']
    #allocation8 [shape = 'u8[393216]{0}', space=vmem, size = 0x60000, scoped, tag = 'input window, operand 2, single buffered']
    #allocation9 [shape = 'u8[1536]{0}', space=vmem, size = 0x800, scoped, tag = 'input window, operand 3, single buffered']
    #allocation10 [shape = 's32[1]{0}', space=sflag, size = 0x4, scoped, tag = 'scoped memory for tpu_custom_call.1']
    #allocation11 [shape = 'u8[512]{0}', space=smem, size = 0x200, scoped, tag = 'input window, operand 4, single buffered']
    #allocation12 [shape = 'u8[196608]{0}', space=vmem, size = 0x30000, scoped, tag = 'output window, operand 0, single buffered']
    %10 = vsyncpa [#allocation3], 0
    %11 = vsyncpa [#allocation7], 0
    %12 = vsyncpa [#allocation10], 0
    %13 = vsyncpa [#allocation5], 0
    %14 = vsyncpa [#allocation4], 0
    // Predicated region
    $region2: #{tpu_custom_call.1} parent=1 // pred_check
      _
    $region3: #{tpu_custom_call.1} parent=1 // pred_check_branch
      %16 = sbr.rel (0) target = $region5
    $region4: #{tpu_custom_call.1} parent=1 // pred_region
      %18 = vsyncadd [#allocation3], 0
      %s19 = sshll.u32 %s0, 4
      %s20 = int_to_ptr.hbm [resolvable:$true] %s19
      %s21 = sshll.u32 [#allocation2], 4
      %s22 = int_to_ptr.vmem [resolvable:$true] %s21
      %27 = dma.hbm_to_vmem [thread:$0]  %s20, 1024, %s22, [#allocation3], 64, 64, 4
    $region5: #{tpu_custom_call.1} parent=1 // pred_fallthru
      _
    // Predicated region
    $region6: #{tpu_custom_call.1} parent=1 // pred_check
      _
    $region7: #{tpu_custom_call.1} parent=1 // pred_check_branch
      %29 = sbr.rel (0) target = $region9
    $region8: #{tpu_custom_call.1} parent=1 // pred_region
      %31 = vsyncadd [#allocation7], 0
      %s32 = sshll.u32 %s1, 4
      %s33 = int_to_ptr.hbm [resolvable:$true] %s32
      %s34 = sshll.u32 [#allocation6], 4
      %s35 = int_to_ptr.vmem [resolvable:$true] %s34
      %40 = dma.hbm_to_vmem [thread:$0]  %s33, 2048, %s35, [#allocation7], 128, 128, 8
    $region9: #{tpu_custom_call.1} parent=1 // pred_fallthru
      _
    // Predicated region
    $region10: #{tpu_custom_call.1} parent=1 // pred_check
      _
    $region11: #{tpu_custom_call.1} parent=1 // pred_check_branch
      %42 = sbr.rel (0) target = $region13
    $region12: #{tpu_custom_call.1} parent=1 // pred_region
      %44 = vsyncadd [#allocation7], 0
      %s45 = sshll.u32 %s2, 4
      %s46 = int_to_ptr.hbm [resolvable:$true] %s45
      %s47 = sshll.u32 [#allocation8], 4
      %s48 = int_to_ptr.vmem [resolvable:$true] %s47
      %53 = dma.hbm_to_vmem [thread:$0]  %s46, 12288, %s48, [#allocation7], 128, 128, 8
    $region13: #{tpu_custom_call.1} parent=1 // pred_fallthru
      _
    // Predicated region
    $region14: #{tpu_custom_call.1} parent=1 // pred_check
      _
    $region15: #{tpu_custom_call.1} parent=1 // pred_check_branch
      %55 = sbr.rel (0) target = $region17
    $region16: #{tpu_custom_call.1} parent=1 // pred_region
      %57 = vsyncadd [#allocation10], 0
      %s58 = sshll.u32 %s3, 4
      %s59 = int_to_ptr.hbm [resolvable:$true] %s58
      %s60 = sshll.u32 [#allocation9], 4
      %s61 = int_to_ptr.vmem [resolvable:$true] %s60
      %66 = dma.hbm_to_vmem [thread:$0]  %s59, 48, %s61, [#allocation10], 16, 16, 1
    $region17: #{tpu_custom_call.1} parent=1 // pred_fallthru
      _
    // Predicated region
    $region18: #{tpu_custom_call.1} parent=1 // pred_check
      _
    $region19: #{tpu_custom_call.1} parent=1 // pred_check_branch
      %68 = sbr.rel (0) target = $region21
    $region20: #{tpu_custom_call.1} parent=1 // pred_region
      %70 = vsyncadd [#allocation5], 0
      %s72 = sshll.u32 %s4, 4
      %s73 = int_to_ptr.vmem [resolvable:$true] %s72
      %75 = dma.vmem_to_smem %s73, 16, [#allocation11], [#allocation5]
    $region21: #{tpu_custom_call.1} parent=1 // pred_fallthru
      _
    // Predicated region
    $region22: #{tpu_custom_call.1} parent=1 // pred_check
      _
    $region23: #{tpu_custom_call.1} parent=1 // pred_check_branch
      %77 = sbr.rel (0) target = $region25
    $region24: #{tpu_custom_call.1} parent=1 // pred_region
      %79 = dma.done [#allocation3], 1024
    $region25: #{tpu_custom_call.1} parent=1 // pred_fallthru
      _
    // Predicated region
    $region26: #{tpu_custom_call.1} parent=1 // pred_check
      _
    $region27: #{tpu_custom_call.1} parent=1 // pred_check_branch
      %81 = sbr.rel (0) target = $region29
    $region28: #{tpu_custom_call.1} parent=1 // pred_region
      %83 = dma.done [#allocation7], 2048
    $region29: #{tpu_custom_call.1} parent=1 // pred_fallthru
      _
    // Predicated region
    $region30: #{tpu_custom_call.1} parent=1 // pred_check
      _
    $region31: #{tpu_custom_call.1} parent=1 // pred_check_branch
      %85 = sbr.rel (0) target = $region33
    $region32: #{tpu_custom_call.1} parent=1 // pred_region
      %87 = dma.done [#allocation7], 12288
    $region33: #{tpu_custom_call.1} parent=1 // pred_fallthru
      _
    // Predicated region
    $region34: #{tpu_custom_call.1} parent=1 // pred_check
      _
    $region35: #{tpu_custom_call.1} parent=1 // pred_check_branch
      %89 = sbr.rel (0) target = $region37
    $region36: #{tpu_custom_call.1} parent=1 // pred_region
      %91 = dma.done [#allocation10], 48
    $region37: #{tpu_custom_call.1} parent=1 // pred_fallthru
      _
    // Predicated region
    $region38: #{tpu_custom_call.1} parent=1 // pred_check
      _
    $region39: #{tpu_custom_call.1} parent=1 // pred_check_branch
      %93 = sbr.rel (0) target = $region41
    $region40: #{tpu_custom_call.1} parent=1 // pred_region
      %95 = dma.done [#allocation5], 16
    $region41: #{tpu_custom_call.1} parent=1 // pred_fallthru
      _
    %96 = sfence
    %v97 = vld [vmem:[#allocation2] sm:$0xf]
    %v98 = vld [vmem:[#allocation2 + $0x4] sm:$0xf]
    %v99 = vld [vmem:[#allocation2 + $0x8] sm:$0xf]
    %v100 = vld [vmem:[#allocation2 + $0xc] sm:$0xf]
    %v101 = vld [vmem:[#allocation2 + $0x10] sm:$0xf]
    %v102 = vld [vmem:[#allocation2 + $0x14] sm:$0xf]
    %v103 = vld [vmem:[#allocation2 + $0x18] sm:$0xf]
    %v104 = vld [vmem:[#allocation2 + $0x1c] sm:$0xf]
    %v105 = vld [vmem:[#allocation2 + $0x20] sm:$0xf]
    %v106 = vld [vmem:[#allocation2 + $0x24] sm:$0xf]
    %v107 = vld [vmem:[#allocation2 + $0x28] sm:$0xf]
    %v108 = vld [vmem:[#allocation2 + $0x2c] sm:$0xf]
    %v109 = vld [vmem:[#allocation2 + $0x30] sm:$0xf]
    %v110 = vld [vmem:[#allocation2 + $0x34] sm:$0xf]
    %v111 = vld [vmem:[#allocation2 + $0x38] sm:$0xf]
    %v112 = vld [vmem:[#allocation2 + $0x3c] sm:$0xf]
    %v113 = vunpack.c.l.bf16 %v97
    %v114 = vunpack.c.l.bf16 %v98
    %v115 = vunpack.c.l.bf16 %v99
    %v116 = vunpack.c.l.bf16 %v100
    %v117 = vunpack.c.l.bf16 %v101
    %v118 = vunpack.c.l.bf16 %v102
    %v119 = vunpack.c.l.bf16 %v103
    %v120 = vunpack.c.l.bf16 %v104
    %v121 = vunpack.c.l.bf16 %v105
    %v122 = vunpack.c.l.bf16 %v106
    %v123 = vunpack.c.l.bf16 %v107
    %v124 = vunpack.c.l.bf16 %v108
    %v125 = vunpack.c.l.bf16 %v109
    %v126 = vunpack.c.l.bf16 %v110
    %v127 = vunpack.c.l.bf16 %v111
    %v128 = vunpack.c.l.bf16 %v112
    %129 = vadd.xlane.f32.xlu0 %v113
    %v130 = vpop.xlane.xlu0 %129
    %131 = vadd.xlane.f32.xlu0 %v114
    %v132 = vpop.xlane.xlu0 %131
    %133 = vadd.xlane.f32.xlu0 %v115
    %v134 = vpop.xlane.xlu0 %133
    %135 = vadd.xlane.f32.xlu0 %v116
    %v136 = vpop.xlane.xlu0 %135
    %137 = vadd.xlane.f32.xlu0 %v117
    %v138 = vpop.xlane.xlu0 %137
    %139 = vadd.xlane.f32.xlu0 %v118
    %v140 = vpop.xlane.xlu0 %139
    %141 = vadd.xlane.f32.xlu0 %v119
    %v142 = vpop.xlane.xlu0 %141
    %143 = vadd.xlane.f32.xlu0 %v120
    %v144 = vpop.xlane.xlu0 %143
    %145 = vadd.xlane.f32.xlu0 %v121
    %v146 = vpop.xlane.xlu0 %145
    %147 = vadd.xlane.f32.xlu0 %v122
    %v148 = vpop.xlane.xlu0 %147
    %149 = vadd.xlane.f32.xlu0 %v123
    %v150 = vpop.xlane.xlu0 %149
    %151 = vadd.xlane.f32.xlu0 %v124
    %v152 = vpop.xlane.xlu0 %151
    %153 = vadd.xlane.f32.xlu0 %v125
    %v154 = vpop.xlane.xlu0 %153
    %155 = vadd.xlane.f32.xlu0 %v126
    %v156 = vpop.xlane.xlu0 %155
    %157 = vadd.xlane.f32.xlu0 %v127
    %v158 = vpop.xlane.xlu0 %157
    %159 = vadd.xlane.f32.xlu0 %v128
    %v160 = vpop.xlane.xlu0 %159
    %vm161 = vcmp.gt.f32.partialorder %v130, 0.0
    %vm162 = vcmp.gt.f32.partialorder %v132, 0.0
    %vm163 = vcmp.gt.f32.partialorder %v134, 0.0
    %vm164 = vcmp.gt.f32.partialorder %v136, 0.0
    %vm165 = vcmp.gt.f32.partialorder %v138, 0.0
    %vm166 = vcmp.gt.f32.partialorder %v140, 0.0
    %vm167 = vcmp.gt.f32.partialorder %v142, 0.0
    %vm168 = vcmp.gt.f32.partialorder %v144, 0.0
    %vm169 = vcmp.gt.f32.partialorder %v146, 0.0
    %vm170 = vcmp.gt.f32.partialorder %v148, 0.0
    %vm171 = vcmp.gt.f32.partialorder %v150, 0.0
    %vm172 = vcmp.gt.f32.partialorder %v152, 0.0
    %vm173 = vcmp.gt.f32.partialorder %v154, 0.0
    %vm174 = vcmp.gt.f32.partialorder %v156, 0.0
    %vm175 = vcmp.gt.f32.partialorder %v158, 0.0
    %vm176 = vcmp.gt.f32.partialorder %v160, 0.0
    %v177 = vmax.f32 %v130, 1.0
    %v178 = vmax.f32 %v132, 1.0
    %v179 = vmax.f32 %v134, 1.0
    %v180 = vmax.f32 %v136, 1.0
    %v181 = vmax.f32 %v138, 1.0
    %v182 = vmax.f32 %v140, 1.0
    %v183 = vmax.f32 %v142, 1.0
    %v184 = vmax.f32 %v144, 1.0
    %v185 = vmax.f32 %v146, 1.0
    %v186 = vmax.f32 %v148, 1.0
    %v187 = vmax.f32 %v150, 1.0
    %v188 = vmax.f32 %v152, 1.0
    %v189 = vmax.f32 %v154, 1.0
    %v190 = vmax.f32 %v156, 1.0
    %v191 = vmax.f32 %v158, 1.0
    %v192 = vmax.f32 %v160, 1.0
    %v193 = vrcp.pop %v177
    %v194 = vmul.f32 %v177, %v193
    %v195 = vsub.f32 1.0, %v194
    %v196 = vmul.f32 %v193, %v195
    %v197 = vadd.f32 %v193, %v196
    %vm198 = vweird.f32 %v177
    %vm199 = vweird.f32 %v193
    %vm200 = vmor %vm198, %vm199
    %v201 = vsel %vm200, %v193, %v197
    %v202 = vand.u32 2147483647, %v177
    %vm203 = vcmp.eq.f32.partialorder %v202, 8.507059e+37
    %v204 = vand.u32 %v177, 2147483648
    %v205 = vor.u32 1.1754944e-38, %v204
    %v206 = vsel %vm203, %v205, %v201
    %v207 = vmul.f32 1.0, %v206
    %v208 = vrcp.pop %v178
    %v209 = vmul.f32 %v178, %v208
    %v210 = vsub.f32 1.0, %v209
    %v211 = vmul.f32 %v208, %v210
    %v212 = vadd.f32 %v208, %v211
    %vm213 = vweird.f32 %v178
    %vm214 = vweird.f32 %v208
    %vm215 = vmor %vm213, %vm214
    %v216 = vsel %vm215, %v208, %v212
    %v217 = vand.u32 2147483647, %v178
    %vm218 = vcmp.eq.f32.partialorder %v217, 8.507059e+37
    %v219 = vand.u32 %v178, 2147483648
    %v220 = vor.u32 1.1754944e-38, %v219
    %v221 = vsel %vm218, %v220, %v216
    %v222 = vmul.f32 1.0, %v221
    %v223 = vrcp.pop %v179
    %v224 = vmul.f32 %v179, %v223
    %v225 = vsub.f32 1.0, %v224
    %v226 = vmul.f32 %v223, %v225
    %v227 = vadd.f32 %v223, %v226
    %vm228 = vweird.f32 %v179
    %vm229 = vweird.f32 %v223
    %vm230 = vmor %vm228, %vm229
    %v231 = vsel %vm230, %v223, %v227
    %v232 = vand.u32 2147483647, %v179
    %vm233 = vcmp.eq.f32.partialorder %v232, 8.507059e+37
    %v234 = vand.u32 %v179, 2147483648
    %v235 = vor.u32 1.1754944e-38, %v234
    %v236 = vsel %vm233, %v235, %v231
    %v237 = vmul.f32 1.0, %v236
    %v238 = vrcp.pop %v180
    %v239 = vmul.f32 %v180, %v238
    %v240 = vsub.f32 1.0, %v239
    %v241 = vmul.f32 %v238, %v240
    %v242 = vadd.f32 %v238, %v241
    %vm243 = vweird.f32 %v180
    %vm244 = vweird.f32 %v238
    %vm245 = vmor %vm243, %vm244
    %v246 = vsel %vm245, %v238, %v242
    %v247 = vand.u32 2147483647, %v180
    %vm248 = vcmp.eq.f32.partialorder %v247, 8.507059e+37
    %v249 = vand.u32 %v180, 2147483648
    %v250 = vor.u32 1.1754944e-38, %v249
    %v251 = vsel %vm248, %v250, %v246
    %v252 = vmul.f32 1.0, %v251
    %v253 = vrcp.pop %v181
    %v254 = vmul.f32 %v181, %v253
    %v255 = vsub.f32 1.0, %v254
    %v256 = vmul.f32 %v253, %v255
    %v257 = vadd.f32 %v253, %v256
    %vm258 = vweird.f32 %v181
    %vm259 = vweird.f32 %v253
    %vm260 = vmor %vm258, %vm259
    %v261 = vsel %vm260, %v253, %v257
    %v262 = vand.u32 2147483647, %v181
    %vm263 = vcmp.eq.f32.partialorder %v262, 8.507059e+37
    %v264 = vand.u32 %v181, 2147483648
    %v265 = vor.u32 1.1754944e-38, %v264
    %v266 = vsel %vm263, %v265, %v261
    %v267 = vmul.f32 1.0, %v266
    %v268 = vrcp.pop %v182
    %v269 = vmul.f32 %v182, %v268
    %v270 = vsub.f32 1.0, %v269
    %v271 = vmul.f32 %v268, %v270
    %v272 = vadd.f32 %v268, %v271
    %vm273 = vweird.f32 %v182
    %vm274 = vweird.f32 %v268
    %vm275 = vmor %vm273, %vm274
    %v276 = vsel %vm275, %v268, %v272
    %v277 = vand.u32 2147483647, %v182
    %vm278 = vcmp.eq.f32.partialorder %v277, 8.507059e+37
    %v279 = vand.u32 %v182, 2147483648
    %v280 = vor.u32 1.1754944e-38, %v279
    %v281 = vsel %vm278, %v280, %v276
    %v282 = vmul.f32 1.0, %v281
    %v283 = vrcp.pop %v183
    %v284 = vmul.f32 %v183, %v283
    %v285 = vsub.f32 1.0, %v284
    %v286 = vmul.f32 %v283, %v285
    %v287 = vadd.f32 %v283, %v286
    %vm288 = vweird.f32 %v183
    %vm289 = vweird.f32 %v283
    %vm290 = vmor %vm288, %vm289
    %v291 = vsel %vm290, %v283, %v287
    %v292 = vand.u32 2147483647, %v183
    %vm293 = vcmp.eq.f32.partialorder %v292, 8.507059e+37
    %v294 = vand.u32 %v183, 2147483648
    %v295 = vor.u32 1.1754944e-38, %v294
    %v296 = vsel %vm293, %v295, %v291
    %v297 = vmul.f32 1.0, %v296
    %v298 = vrcp.pop %v184
    %v299 = vmul.f32 %v184, %v298
    %v300 = vsub.f32 1.0, %v299
    %v301 = vmul.f32 %v298, %v300
    %v302 = vadd.f32 %v298, %v301
    %vm303 = vweird.f32 %v184
    %vm304 = vweird.f32 %v298
    %vm305 = vmor %vm303, %vm304
    %v306 = vsel %vm305, %v298, %v302
    %v307 = vand.u32 2147483647, %v184
    %vm308 = vcmp.eq.f32.partialorder %v307, 8.507059e+37
    %v309 = vand.u32 %v184, 2147483648
    %v310 = vor.u32 1.1754944e-38, %v309
    %v311 = vsel %vm308, %v310, %v306
    %v312 = vmul.f32 1.0, %v311
    %v313 = vrcp.pop %v185
    %v314 = vmul.f32 %v185, %v313
    %v315 = vsub.f32 1.0, %v314
    %v316 = vmul.f32 %v313, %v315
    %v317 = vadd.f32 %v313, %v316
    %vm318 = vweird.f32 %v185
    %vm319 = vweird.f32 %v313
    %vm320 = vmor %vm318, %vm319
    %v321 = vsel %vm320, %v313, %v317
    %v322 = vand.u32 2147483647, %v185
    %vm323 = vcmp.eq.f32.partialorder %v322, 8.507059e+37
    %v324 = vand.u32 %v185, 2147483648
    %v325 = vor.u32 1.1754944e-38, %v324
    %v326 = vsel %vm323, %v325, %v321
    %v327 = vmul.f32 1.0, %v326
    %v328 = vrcp.pop %v186
    %v329 = vmul.f32 %v186, %v328
    %v330 = vsub.f32 1.0, %v329
    %v331 = vmul.f32 %v328, %v330
    %v332 = vadd.f32 %v328, %v331
    %vm333 = vweird.f32 %v186
    %vm334 = vweird.f32 %v328
    %vm335 = vmor %vm333, %vm334
    %v336 = vsel %vm335, %v328, %v332
    %v337 = vand.u32 2147483647, %v186
    %vm338 = vcmp.eq.f32.partialorder %v337, 8.507059e+37
    %v339 = vand.u32 %v186, 2147483648
    %v340 = vor.u32 1.1754944e-38, %v339
    %v341 = vsel %vm338, %v340, %v336
    %v342 = vmul.f32 1.0, %v341
    %v343 = vrcp.pop %v187
    %v344 = vmul.f32 %v187, %v343
    %v345 = vsub.f32 1.0, %v344
    %v346 = vmul.f32 %v343, %v345
    %v347 = vadd.f32 %v343, %v346
    %vm348 = vweird.f32 %v187
    %vm349 = vweird.f32 %v343
    %vm350 = vmor %vm348, %vm349
    %v351 = vsel %vm350, %v343, %v347
    %v352 = vand.u32 2147483647, %v187
    %vm353 = vcmp.eq.f32.partialorder %v352, 8.507059e+37
    %v354 = vand.u32 %v187, 2147483648
    %v355 = vor.u32 1.1754944e-38, %v354
    %v356 = vsel %vm353, %v355, %v351
    %v357 = vmul.f32 1.0, %v356
    %v358 = vrcp.pop %v188
    %v359 = vmul.f32 %v188, %v358
    %v360 = vsub.f32 1.0, %v359
    %v361 = vmul.f32 %v358, %v360
    %v362 = vadd.f32 %v358, %v361
    %vm363 = vweird.f32 %v188
    %vm364 = vweird.f32 %v358
    %vm365 = vmor %vm363, %vm364
    %v366 = vsel %vm365, %v358, %v362
    %v367 = vand.u32 2147483647, %v188
    %vm368 = vcmp.eq.f32.partialorder %v367, 8.507059e+37
    %v369 = vand.u32 %v188, 2147483648
    %v370 = vor.u32 1.1754944e-38, %v369
    %v371 = vsel %vm368, %v370, %v366
    %v372 = vmul.f32 1.0, %v371
    %v373 = vrcp.pop %v189
    %v374 = vmul.f32 %v189, %v373
    %v375 = vsub.f32 1.0, %v374
    %v376 = vmul.f32 %v373, %v375
    %v377 = vadd.f32 %v373, %v376
    %vm378 = vweird.f32 %v189
    %vm379 = vweird.f32 %v373
    %vm380 = vmor %vm378, %vm379
    %v381 = vsel %vm380, %v373, %v377
    %v382 = vand.u32 2147483647, %v189
    %vm383 = vcmp.eq.f32.partialorder %v382, 8.507059e+37
    %v384 = vand.u32 %v189, 2147483648
    %v385 = vor.u32 1.1754944e-38, %v384
    %v386 = vsel %vm383, %v385, %v381
    %v387 = vmul.f32 1.0, %v386
    %v388 = vrcp.pop %v190
    %v389 = vmul.f32 %v190, %v388
    %v390 = vsub.f32 1.0, %v389
    %v391 = vmul.f32 %v388, %v390
    %v392 = vadd.f32 %v388, %v391
    %vm393 = vweird.f32 %v190
    %vm394 = vweird.f32 %v388
    %vm395 = vmor %vm393, %vm394
    %v396 = vsel %vm395, %v388, %v392
    %v397 = vand.u32 2147483647, %v190
    %vm398 = vcmp.eq.f32.partialorder %v397, 8.507059e+37
    %v399 = vand.u32 %v190, 2147483648
    %v400 = vor.u32 1.1754944e-38, %v399
    %v401 = vsel %vm398, %v400, %v396
    %v402 = vmul.f32 1.0, %v401
    %v403 = vrcp.pop %v191
    %v404 = vmul.f32 %v191, %v403
    %v405 = vsub.f32 1.0, %v404
    %v406 = vmul.f32 %v403, %v405
    %v407 = vadd.f32 %v403, %v406
    %vm408 = vweird.f32 %v191
    %vm409 = vweird.f32 %v403
    %vm410 = vmor %vm408, %vm409
    %v411 = vsel %vm410, %v403, %v407
    %v412 = vand.u32 2147483647, %v191
    %vm413 = vcmp.eq.f32.partialorder %v412, 8.507059e+37
    %v414 = vand.u32 %v191, 2147483648
    %v415 = vor.u32 1.1754944e-38, %v414
    %v416 = vsel %vm413, %v415, %v411
    %v417 = vmul.f32 1.0, %v416
    %v418 = vrcp.pop %v192
    %v419 = vmul.f32 %v192, %v418
    %v420 = vsub.f32 1.0, %v419
    %v421 = vmul.f32 %v418, %v420
    %v422 = vadd.f32 %v418, %v421
    %vm423 = vweird.f32 %v192
    %vm424 = vweird.f32 %v418
    %vm425 = vmor %vm423, %vm424
    %v426 = vsel %vm425, %v418, %v422
    %v427 = vand.u32 2147483647, %v192
    %vm428 = vcmp.eq.f32.partialorder %v427, 8.507059e+37
    %v429 = vand.u32 %v192, 2147483648
    %v430 = vor.u32 1.1754944e-38, %v429
    %v431 = vsel %vm428, %v430, %v426
    %v432 = vmul.f32 1.0, %v431
    %v433 = vsel %vm161, %v207, 0.0
    %v434 = vsel %vm162, %v222, 0.0
    %v435 = vsel %vm163, %v237, 0.0
    %v436 = vsel %vm164, %v252, 0.0
    %v437 = vsel %vm165, %v267, 0.0
    %v438 = vsel %vm166, %v282, 0.0
    %v439 = vsel %vm167, %v297, 0.0
    %v440 = vsel %vm168, %v312, 0.0
    %v441 = vsel %vm169, %v327, 0.0
    %v442 = vsel %vm170, %v342, 0.0
    %v443 = vsel %vm171, %v357, 0.0
    %v444 = vsel %vm172, %v372, 0.0
    %v445 = vsel %vm173, %v387, 0.0
    %v446 = vsel %vm174, %v402, 0.0
    %v447 = vsel %vm175, %v417, 0.0
    %v448 = vsel %vm176, %v432, 0.0
    %v449 = vmul.f32 %v113, %v433
    %v450 = vmul.f32 %v114, %v434
    %v451 = vmul.f32 %v115, %v435
    %v452 = vmul.f32 %v116, %v436
    %v453 = vmul.f32 %v117, %v437
    %v454 = vmul.f32 %v118, %v438
    %v455 = vmul.f32 %v119, %v439
    %v456 = vmul.f32 %v120, %v440
    %v457 = vmul.f32 %v121, %v441
    %v458 = vmul.f32 %v122, %v442
    %v459 = vmul.f32 %v123, %v443
    %v460 = vmul.f32 %v124, %v444
    %v461 = vmul.f32 %v125, %v445
    %v462 = vmul.f32 %v126, %v446
    %v463 = vmul.f32 %v127, %v447
    %v464 = vmul.f32 %v128, %v448
    %v465 = vld [vmem:[#allocation6] sm:$0xff]
    %v466 = vld [vmem:[#allocation6 + $0x8] sm:$0xff]
    %v467 = vld [vmem:[#allocation6 + $0x10] sm:$0xff]
    %v468 = vld [vmem:[#allocation6 + $0x18] sm:$0xff]
    %v469 = vld [vmem:[#allocation6 + $0x20] sm:$0xff]
    %v470 = vld [vmem:[#allocation6 + $0x28] sm:$0xff]
    %v471 = vld [vmem:[#allocation6 + $0x30] sm:$0xff]
    %v472 = vld [vmem:[#allocation6 + $0x38] sm:$0xff]
    %v473 = vld [vmem:[#allocation6 + $0x40] sm:$0xff]
    %v474 = vld [vmem:[#allocation6 + $0x48] sm:$0xff]
    %v475 = vld [vmem:[#allocation6 + $0x50] sm:$0xff]
    %v476 = vld [vmem:[#allocation6 + $0x58] sm:$0xff]
    %v477 = vld [vmem:[#allocation6 + $0x60] sm:$0xff]
    %v478 = vld [vmem:[#allocation6 + $0x68] sm:$0xff]
    %v479 = vld [vmem:[#allocation6 + $0x70] sm:$0xff]
    %v480 = vld [vmem:[#allocation6 + $0x78] sm:$0xff]
    %481 = vmatpush.msra.mxu0 %v480
    %482 = vmatpush.msra.mxu0 %v479
    %483 = vmatpush.msra.mxu0 %v478
    %484 = vmatpush.msra.mxu0 %v477
    %485 = vmatpush.msra.mxu0 %v476
    %486 = vmatpush.msra.mxu0 %v475
    %487 = vmatpush.msra.mxu0 %v474
    %488 = vmatpush.msra.mxu0 %v473
    %489 = vmatpush.msra.mxu0 %v472
    %490 = vmatpush.msra.mxu0 %v471
    %491 = vmatpush.msra.mxu0 %v470
    %492 = vmatpush.msra.mxu0 %v469
    %493 = vmatpush.msra.mxu0 %v468
    %494 = vmatpush.msra.mxu0 %v467
    %495 = vmatpush.msra.mxu0 %v466
    %496 = vmatpush.msra.mxu0 %v465
    %497 = vmatmul.f32.gmra.mxu0 %v449
    %v498 = vpop.f32.mrf.mxu0
    %v499 = vadd.f32 0.0, %v498
    %500 = vmatmul.f32.gmra.mxu0 %v450
    %v501 = vpop.f32.mrf.mxu0
    %v502 = vadd.f32 0.0, %v501
    %503 = vmatmul.f32.gmra.mxu0 %v451
    %v504 = vpop.f32.mrf.mxu0
    %v505 = vadd.f32 0.0, %v504
    %506 = vmatmul.f32.gmra.mxu0 %v452
    %v507 = vpop.f32.mrf.mxu0
    %v508 = vadd.f32 0.0, %v507
    %509 = vmatmul.f32.gmra.mxu0 %v453
    %v510 = vpop.f32.mrf.mxu0
    %v511 = vadd.f32 0.0, %v510
    %512 = vmatmul.f32.gmra.mxu0 %v454
    %v513 = vpop.f32.mrf.mxu0
    %v514 = vadd.f32 0.0, %v513
    %515 = vmatmul.f32.gmra.mxu0 %v455
    %v516 = vpop.f32.mrf.mxu0
    %v517 = vadd.f32 0.0, %v516
    %518 = vmatmul.f32.gmra.mxu0 %v456
    %v519 = vpop.f32.mrf.mxu0
    %v520 = vadd.f32 0.0, %v519
    %521 = vmatmul.f32.gmra.mxu0 %v457
    %v522 = vpop.f32.mrf.mxu0
    %v523 = vadd.f32 0.0, %v522
    %524 = vmatmul.f32.gmra.mxu0 %v458
    %v525 = vpop.f32.mrf.mxu0
    %v526 = vadd.f32 0.0, %v525
    %527 = vmatmul.f32.gmra.mxu0 %v459
    %v528 = vpop.f32.mrf.mxu0
    %v529 = vadd.f32 0.0, %v528
    %530 = vmatmul.f32.gmra.mxu0 %v460
    %v531 = vpop.f32.mrf.mxu0
    %v532 = vadd.f32 0.0, %v531
    %533 = vmatmul.f32.gmra.mxu0 %v461
    %v534 = vpop.f32.mrf.mxu0
    %v535 = vadd.f32 0.0, %v534
    %536 = vmatmul.f32.gmra.mxu0 %v462
    %v537 = vpop.f32.mrf.mxu0
    %v538 = vadd.f32 0.0, %v537
    %539 = vmatmul.f32.gmra.mxu0 %v463
    %v540 = vpop.f32.mrf.mxu0
    %v541 = vadd.f32 0.0, %v540
    %542 = vmatmul.f32.gmra.mxu0 %v464
    %v543 = vpop.f32.mrf.mxu0
    %v544 = vadd.f32 0.0, %v543
    %545 = vdwg.mxu0
    %v546 = vld [vmem:[#allocation8] sm:$0xff]
    %v547 = vld [vmem:[#allocation8 + $0x8] sm:$0xff]
    %v548 = vld [vmem:[#allocation8 + $0x10] sm:$0xff]
    %v549 = vld [vmem:[#allocation8 + $0x18] sm:$0xff]
    %v550 = vld [vmem:[#allocation8 + $0x20] sm:$0xff]
    %v551 = vld [vmem:[#allocation8 + $0x28] sm:$0xff]
    %v552 = vld [vmem:[#allocation8 + $0x30] sm:$0xff]
    %v553 = vld [vmem:[#allocation8 + $0x38] sm:$0xff]
    %v554 = vld [vmem:[#allocation8 + $0x40] sm:$0xff]
    %v555 = vld [vmem:[#allocation8 + $0x48] sm:$0xff]
    %v556 = vld [vmem:[#allocation8 + $0x50] sm:$0xff]
    %v557 = vld [vmem:[#allocation8 + $0x58] sm:$0xff]
    %v558 = vld [vmem:[#allocation8 + $0x60] sm:$0xff]
    %v559 = vld [vmem:[#allocation8 + $0x68] sm:$0xff]
    %v560 = vld [vmem:[#allocation8 + $0x70] sm:$0xff]
    %v561 = vld [vmem:[#allocation8 + $0x78] sm:$0xff]
    %v562 = vld [vmem:[#allocation8 + $0x80] sm:$0xff]
    %v563 = vld [vmem:[#allocation8 + $0x88] sm:$0xff]
    %v564 = vld [vmem:[#allocation8 + $0x90] sm:$0xff]
    %v565 = vld [vmem:[#allocation8 + $0x98] sm:$0xff]
    %v566 = vld [vmem:[#allocation8 + $0xa0] sm:$0xff]
    %v567 = vld [vmem:[#allocation8 + $0xa8] sm:$0xff]
    %v568 = vld [vmem:[#allocation8 + $0xb0] sm:$0xff]
    %v569 = vld [vmem:[#allocation8 + $0xb8] sm:$0xff]
    %v570 = vld [vmem:[#allocation8 + $0xc0] sm:$0xff]
    %v571 = vld [vmem:[#allocation8 + $0xc8] sm:$0xff]
    %v572 = vld [vmem:[#allocation8 + $0xd0] sm:$0xff]
    %v573 = vld [vmem:[#allocation8 + $0xd8] sm:$0xff]
    %v574 = vld [vmem:[#allocation8 + $0xe0] sm:$0xff]
    %v575 = vld [vmem:[#allocation8 + $0xe8] sm:$0xff]
    %v576 = vld [vmem:[#allocation8 + $0xf0] sm:$0xff]
    %v577 = vld [vmem:[#allocation8 + $0xf8] sm:$0xff]
    %v578 = vld [vmem:[#allocation9] sm:$0x1]
    %v580 = vperm.slane %v578, 0
    %582 = vmatpush.msra.mxu0 %v561
    %583 = vmatpush.msra.mxu0 %v560
    %584 = vmatpush.msra.mxu0 %v559
    %585 = vmatpush.msra.mxu0 %v558
    %586 = vmatpush.msra.mxu0 %v557
    %587 = vmatpush.msra.mxu0 %v556
    %588 = vmatpush.msra.mxu0 %v555
    %589 = vmatpush.msra.mxu0 %v554
    %590 = vmatpush.msra.mxu0 %v553
    %591 = vmatpush.msra.mxu0 %v552
    %592 = vmatpush.msra.mxu0 %v551
    %593 = vmatpush.msra.mxu0 %v550
    %594 = vmatpush.msra.mxu0 %v549
    %595 = vmatpush.msra.mxu0 %v548
    %596 = vmatpush.msra.mxu0 %v547
    %597 = vmatpush.msra.mxu0 %v546
    %598 = vmatmul.f32.gmra.mxu0 %v499
    %v599 = vpop.f32.mrf.mxu0
    %v600 = vadd.f32 %v580, %v599
    %601 = vmatmul.f32.gmra.mxu0 %v502
    %v602 = vpop.f32.mrf.mxu0
    %v603 = vadd.f32 %v580, %v602
    %604 = vmatmul.f32.gmra.mxu0 %v505
    %v605 = vpop.f32.mrf.mxu0
    %v606 = vadd.f32 %v580, %v605
    %607 = vmatmul.f32.gmra.mxu0 %v508
    %v608 = vpop.f32.mrf.mxu0
    %v609 = vadd.f32 %v580, %v608
    %610 = vmatmul.f32.gmra.mxu0 %v511
    %v611 = vpop.f32.mrf.mxu0
    %v612 = vadd.f32 %v580, %v611
    %613 = vmatmul.f32.gmra.mxu0 %v514
    %v614 = vpop.f32.mrf.mxu0
    %v615 = vadd.f32 %v580, %v614
    %616 = vmatmul.f32.gmra.mxu0 %v517
    %v617 = vpop.f32.mrf.mxu0
    %v618 = vadd.f32 %v580, %v617
    %619 = vmatmul.f32.gmra.mxu0 %v520
    %v620 = vpop.f32.mrf.mxu0
    %v621 = vadd.f32 %v580, %v620
    %622 = vmatmul.f32.gmra.mxu0 %v523
    %v623 = vpop.f32.mrf.mxu0
    %v624 = vadd.f32 %v580, %v623
    %625 = vmatmul.f32.gmra.mxu0 %v526
    %v626 = vpop.f32.mrf.mxu0
    %v627 = vadd.f32 %v580, %v626
    %628 = vmatmul.f32.gmra.mxu0 %v529
    %v629 = vpop.f32.mrf.mxu0
    %v630 = vadd.f32 %v580, %v629
    %631 = vmatmul.f32.gmra.mxu0 %v532
    %v632 = vpop.f32.mrf.mxu0
    %v633 = vadd.f32 %v580, %v632
    %634 = vmatmul.f32.gmra.mxu0 %v535
    %v635 = vpop.f32.mrf.mxu0
    %v636 = vadd.f32 %v580, %v635
    %637 = vmatmul.f32.gmra.mxu0 %v538
    %v638 = vpop.f32.mrf.mxu0
    %v639 = vadd.f32 %v580, %v638
    %640 = vmatmul.f32.gmra.mxu0 %v541
    %v641 = vpop.f32.mrf.mxu0
    %v642 = vadd.f32 %v580, %v641
    %643 = vmatmul.f32.gmra.mxu0 %v544
    %v644 = vpop.f32.mrf.mxu0
    %v645 = vadd.f32 %v580, %v644
    %646 = vdwg.mxu0
    %647 = vmatpush.msra.mxu0 %v577
    %648 = vmatpush.msra.mxu0 %v576
    %649 = vmatpush.msra.mxu0 %v575
    %650 = vmatpush.msra.mxu0 %v574
    %651 = vmatpush.msra.mxu0 %v573
    %652 = vmatpush.msra.mxu0 %v572
    %653 = vmatpush.msra.mxu0 %v571
    %654 = vmatpush.msra.mxu0 %v570
    %655 = vmatpush.msra.mxu0 %v569
    %656 = vmatpush.msra.mxu0 %v568
    %657 = vmatpush.msra.mxu0 %v567
    %658 = vmatpush.msra.mxu0 %v566
    %659 = vmatpush.msra.mxu0 %v565
    %660 = vmatpush.msra.mxu0 %v564
    %661 = vmatpush.msra.mxu0 %v563
    %662 = vmatpush.msra.mxu0 %v562
    %663 = vmatmul.f32.gmra.mxu0 %v465
    %v664 = vpop.f32.mrf.mxu0
    %v665 = vadd.f32 %v600, %v664
    %666 = vmatmul.f32.gmra.mxu0 %v466
    %v667 = vpop.f32.mrf.mxu0
    %v668 = vadd.f32 %v603, %v667
    %669 = vmatmul.f32.gmra.mxu0 %v467
    %v670 = vpop.f32.mrf.mxu0
    %v671 = vadd.f32 %v606, %v670
    %672 = vmatmul.f32.gmra.mxu0 %v468
    %v673 = vpop.f32.mrf.mxu0
    %v674 = vadd.f32 %v609, %v673
    %675 = vmatmul.f32.gmra.mxu0 %v469
    %v676 = vpop.f32.mrf.mxu0
    %v677 = vadd.f32 %v612, %v676
    %678 = vmatmul.f32.gmra.mxu0 %v470
    %v679 = vpop.f32.mrf.mxu0
    %v680 = vadd.f32 %v615, %v679
    %681 = vmatmul.f32.gmra.mxu0 %v471
    %v682 = vpop.f32.mrf.mxu0
    %v683 = vadd.f32 %v618, %v682
    %684 = vmatmul.f32.gmra.mxu0 %v472
    %v685 = vpop.f32.mrf.mxu0
    %v686 = vadd.f32 %v621, %v685
    %687 = vmatmul.f32.gmra.mxu0 %v473
    %v688 = vpop.f32.mrf.mxu0
    %v689 = vadd.f32 %v624, %v688
    %690 = vmatmul.f32.gmra.mxu0 %v474
    %v691 = vpop.f32.mrf.mxu0
    %v692 = vadd.f32 %v627, %v691
    %693 = vmatmul.f32.gmra.mxu0 %v475
    %v694 = vpop.f32.mrf.mxu0
    %v695 = vadd.f32 %v630, %v694
    %696 = vmatmul.f32.gmra.mxu0 %v476
    %v697 = vpop.f32.mrf.mxu0
    %v698 = vadd.f32 %v633, %v697
    %699 = vmatmul.f32.gmra.mxu0 %v477
    %v700 = vpop.f32.mrf.mxu0
    %v701 = vadd.f32 %v636, %v700
    %702 = vmatmul.f32.gmra.mxu0 %v478
    %v703 = vpop.f32.mrf.mxu0
    %v704 = vadd.f32 %v639, %v703
    %705 = vmatmul.f32.gmra.mxu0 %v479
    %v706 = vpop.f32.mrf.mxu0
    %v707 = vadd.f32 %v642, %v706
    %708 = vmatmul.f32.gmra.mxu0 %v480
    %v709 = vpop.f32.mrf.mxu0
    %v710 = vadd.f32 %v645, %v709
    %711 = vdwg.mxu0
    %s712 = sld [smem:[#allocation11]]
    %vm713 = vcmp.gt.f32.partialorder %v665, 0.0
    %vm714 = vcmp.gt.f32.partialorder %v668, 0.0
    %vm715 = vcmp.gt.f32.partialorder %v671, 0.0
    %vm716 = vcmp.gt.f32.partialorder %v674, 0.0
    %vm717 = vcmp.gt.f32.partialorder %v677, 0.0
    %vm718 = vcmp.gt.f32.partialorder %v680, 0.0
    %vm719 = vcmp.gt.f32.partialorder %v683, 0.0
    %vm720 = vcmp.gt.f32.partialorder %v686, 0.0
    %vm721 = vcmp.gt.f32.partialorder %v689, 0.0
    %vm722 = vcmp.gt.f32.partialorder %v692, 0.0
    %vm723 = vcmp.gt.f32.partialorder %v695, 0.0
    %vm724 = vcmp.gt.f32.partialorder %v698, 0.0
    %vm725 = vcmp.gt.f32.partialorder %v701, 0.0
    %vm726 = vcmp.gt.f32.partialorder %v704, 0.0
    %vm727 = vcmp.gt.f32.partialorder %v707, 0.0
    %vm728 = vcmp.gt.f32.partialorder %v710, 0.0
    %v729 = vstv %s712
    %v730 = vmul.f32 %v729, %v665
    %v731 = vmul.f32 %v729, %v668
    %v732 = vmul.f32 %v729, %v671
    %v733 = vmul.f32 %v729, %v674
    %v734 = vmul.f32 %v729, %v677
    %v735 = vmul.f32 %v729, %v680
    %v736 = vmul.f32 %v729, %v683
    %v737 = vmul.f32 %v729, %v686
    %v738 = vmul.f32 %v729, %v689
    %v739 = vmul.f32 %v729, %v692
    %v740 = vmul.f32 %v729, %v695
    %v741 = vmul.f32 %v729, %v698
    %v742 = vmul.f32 %v729, %v701
    %v743 = vmul.f32 %v729, %v704
    %v744 = vmul.f32 %v729, %v707
    %v745 = vmul.f32 %v729, %v710
    %v746 = vsel %vm713, %v665, %v730
    %v747 = vsel %vm714, %v668, %v731
    %v748 = vsel %vm715, %v671, %v732
    %v749 = vsel %vm716, %v674, %v733
    %v750 = vsel %vm717, %v677, %v734
    %v751 = vsel %vm718, %v680, %v735
    %v752 = vsel %vm719, %v683, %v736
    %v753 = vsel %vm720, %v686, %v737
    %v754 = vsel %vm721, %v689, %v738
    %v755 = vsel %vm722, %v692, %v739
    %v756 = vsel %vm723, %v695, %v740
    %v757 = vsel %vm724, %v698, %v741
    %v758 = vsel %vm725, %v701, %v742
    %v759 = vsel %vm726, %v704, %v743
    %v760 = vsel %vm727, %v707, %v744
    %v761 = vsel %vm728, %v710, %v745
    %762 = vst [vmem:[#allocation12] sm:$0xff] %v746
    %763 = vst [vmem:[#allocation12 + $0x8] sm:$0xff] %v747
    %764 = vst [vmem:[#allocation12 + $0x10] sm:$0xff] %v748
    %765 = vst [vmem:[#allocation12 + $0x18] sm:$0xff] %v749
    %766 = vst [vmem:[#allocation12 + $0x20] sm:$0xff] %v750
    %767 = vst [vmem:[#allocation12 + $0x28] sm:$0xff] %v751
    %768 = vst [vmem:[#allocation12 + $0x30] sm:$0xff] %v752
    %769 = vst [vmem:[#allocation12 + $0x38] sm:$0xff] %v753
    %770 = vst [vmem:[#allocation12 + $0x40] sm:$0xff] %v754
    %771 = vst [vmem:[#allocation12 + $0x48] sm:$0xff] %v755
    %772 = vst [vmem:[#allocation12 + $0x50] sm:$0xff] %v756
    %773 = vst [vmem:[#allocation12 + $0x58] sm:$0xff] %v757
    %774 = vst [vmem:[#allocation12 + $0x60] sm:$0xff] %v758
    %775 = vst [vmem:[#allocation12 + $0x68] sm:$0xff] %v759
    %776 = vst [vmem:[#allocation12 + $0x70] sm:$0xff] %v760
    %777 = vst [vmem:[#allocation12 + $0x78] sm:$0xff] %v761
    %778 = vmatpush.msra.mxu0 %v761
    %779 = vmatpush.msra.mxu0 %v760
    %780 = vmatpush.msra.mxu0 %v759
    %781 = vmatpush.msra.mxu0 %v758
    %782 = vmatpush.msra.mxu0 %v757
    %783 = vmatpush.msra.mxu0 %v756
    %784 = vmatpush.msra.mxu0 %v755
    %785 = vmatpush.msra.mxu0 %v754
    %786 = vmatpush.msra.mxu0 %v753
    %787 = vmatpush.msra.mxu0 %v752
    %788 = vmatpush.msra.mxu0 %v751
    %789 = vmatpush.msra.mxu0 %v750
    %790 = vmatpush.msra.mxu0 %v749
    %791 = vmatpush.msra.mxu0 %v748
    %792 = vmatpush.msra.mxu0 %v747
    %793 = vmatpush.msra.mxu0 %v746
    %794 = vmatmul.f32.gmra.mxu0 %v449
    %v795 = vpop.f32.mrf.mxu0
    %v796 = vadd.f32 0.0, %v795
    %797 = vmatmul.f32.gmra.mxu0 %v450
    %v798 = vpop.f32.mrf.mxu0
    %v799 = vadd.f32 0.0, %v798
    %800 = vmatmul.f32.gmra.mxu0 %v451
    %v801 = vpop.f32.mrf.mxu0
    %v802 = vadd.f32 0.0, %v801
    %803 = vmatmul.f32.gmra.mxu0 %v452
    %v804 = vpop.f32.mrf.mxu0
    %v805 = vadd.f32 0.0, %v804
    %806 = vmatmul.f32.gmra.mxu0 %v453
    %v807 = vpop.f32.mrf.mxu0
    %v808 = vadd.f32 0.0, %v807
    %809 = vmatmul.f32.gmra.mxu0 %v454
    %v810 = vpop.f32.mrf.mxu0
    %v811 = vadd.f32 0.0, %v810
    %812 = vmatmul.f32.gmra.mxu0 %v455
    %v813 = vpop.f32.mrf.mxu0
    %v814 = vadd.f32 0.0, %v813
    %815 = vmatmul.f32.gmra.mxu0 %v456
    %v816 = vpop.f32.mrf.mxu0
    %v817 = vadd.f32 0.0, %v816
    %818 = vmatmul.f32.gmra.mxu0 %v457
    %v819 = vpop.f32.mrf.mxu0
    %v820 = vadd.f32 0.0, %v819
    %821 = vmatmul.f32.gmra.mxu0 %v458
    %v822 = vpop.f32.mrf.mxu0
    %v823 = vadd.f32 0.0, %v822
    %824 = vmatmul.f32.gmra.mxu0 %v459
    %v825 = vpop.f32.mrf.mxu0
    %v826 = vadd.f32 0.0, %v825
    %827 = vmatmul.f32.gmra.mxu0 %v460
    %v828 = vpop.f32.mrf.mxu0
    %v829 = vadd.f32 0.0, %v828
    %830 = vmatmul.f32.gmra.mxu0 %v461
    %v831 = vpop.f32.mrf.mxu0
    %v832 = vadd.f32 0.0, %v831
    %833 = vmatmul.f32.gmra.mxu0 %v462
    %v834 = vpop.f32.mrf.mxu0
    %v835 = vadd.f32 0.0, %v834
    %836 = vmatmul.f32.gmra.mxu0 %v463
    %v837 = vpop.f32.mrf.mxu0
    %v838 = vadd.f32 0.0, %v837
    %839 = vmatmul.f32.gmra.mxu0 %v464
    %v840 = vpop.f32.mrf.mxu0
    %v841 = vadd.f32 0.0, %v840
    %842 = vdwg.mxu0
    %s843 = scalar_lea.vmem [#allocation8], 256
    %v844 = vld [vmem:[%s843] sm:$0xff]
    %v845 = vld [vmem:[%s843 + $0x8] sm:$0xff]
    %v846 = vld [vmem:[%s843 + $0x10] sm:$0xff]
    %v847 = vld [vmem:[%s843 + $0x18] sm:$0xff]
    %v848 = vld [vmem:[%s843 + $0x20] sm:$0xff]
    %v849 = vld [vmem:[%s843 + $0x28] sm:$0xff]
    %v850 = vld [vmem:[%s843 + $0x30] sm:$0xff]
    %v851 = vld [vmem:[%s843 + $0x38] sm:$0xff]
    %v852 = vld [vmem:[%s843 + $0x40] sm:$0xff]
    %v853 = vld [vmem:[%s843 + $0x48] sm:$0xff]
    %v854 = vld [vmem:[%s843 + $0x50] sm:$0xff]
    %v855 = vld [vmem:[%s843 + $0x58] sm:$0xff]
    %v856 = vld [vmem:[%s843 + $0x60] sm:$0xff]
    %v857 = vld [vmem:[%s843 + $0x68] sm:$0xff]
    %v858 = vld [vmem:[%s843 + $0x70] sm:$0xff]
    %v859 = vld [vmem:[%s843 + $0x78] sm:$0xff]
    %v860 = vld [vmem:[%s843 + $0x80] sm:$0xff]
    %v861 = vld [vmem:[%s843 + $0x88] sm:$0xff]
    %v862 = vld [vmem:[%s843 + $0x90] sm:$0xff]
    %v863 = vld [vmem:[%s843 + $0x98] sm:$0xff]
    %v864 = vld [vmem:[%s843 + $0xa0] sm:$0xff]
    %v865 = vld [vmem:[%s843 + $0xa8] sm:$0xff]
    %v866 = vld [vmem:[%s843 + $0xb0] sm:$0xff]
    %v867 = vld [vmem:[%s843 + $0xb8] sm:$0xff]
    %v868 = vld [vmem:[%s843 + $0xc0] sm:$0xff]
    %v869 = vld [vmem:[%s843 + $0xc8] sm:$0xff]
    %v870 = vld [vmem:[%s843 + $0xd0] sm:$0xff]
    %v871 = vld [vmem:[%s843 + $0xd8] sm:$0xff]
    %v872 = vld [vmem:[%s843 + $0xe0] sm:$0xff]
    %v873 = vld [vmem:[%s843 + $0xe8] sm:$0xff]
    %v874 = vld [vmem:[%s843 + $0xf0] sm:$0xff]
    %v875 = vld [vmem:[%s843 + $0xf8] sm:$0xff]
    %s876 = scalar_lea.vmem [#allocation9], 1
    %v877 = vld [vmem:[%s876] sm:$0x1]
    %v879 = vperm.slane %v877, 0
    %881 = vmatpush.msra.mxu0 %v859
    %882 = vmatpush.msra.mxu0 %v858
    %883 = vmatpush.msra.mxu0 %v857
    %884 = vmatpush.msra.mxu0 %v856
    %885 = vmatpush.msra.mxu0 %v855
    %886 = vmatpush.msra.mxu0 %v854
    %887 = vmatpush.msra.mxu0 %v853
    %888 = vmatpush.msra.mxu0 %v852
    %889 = vmatpush.msra.mxu0 %v851
    %890 = vmatpush.msra.mxu0 %v850
    %891 = vmatpush.msra.mxu0 %v849
    %892 = vmatpush.msra.mxu0 %v848
    %893 = vmatpush.msra.mxu0 %v847
    %894 = vmatpush.msra.mxu0 %v846
    %895 = vmatpush.msra.mxu0 %v845
    %896 = vmatpush.msra.mxu0 %v844
    %897 = vmatmul.f32.gmra.mxu0 %v796
    %v898 = vpop.f32.mrf.mxu0
    %v899 = vadd.f32 %v879, %v898
    %900 = vmatmul.f32.gmra.mxu0 %v799
    %v901 = vpop.f32.mrf.mxu0
    %v902 = vadd.f32 %v879, %v901
    %903 = vmatmul.f32.gmra.mxu0 %v802
    %v904 = vpop.f32.mrf.mxu0
    %v905 = vadd.f32 %v879, %v904
    %906 = vmatmul.f32.gmra.mxu0 %v805
    %v907 = vpop.f32.mrf.mxu0
    %v908 = vadd.f32 %v879, %v907
    %909 = vmatmul.f32.gmra.mxu0 %v808
    %v910 = vpop.f32.mrf.mxu0
    %v911 = vadd.f32 %v879, %v910
    %912 = vmatmul.f32.gmra.mxu0 %v811
    %v913 = vpop.f32.mrf.mxu0
    %v914 = vadd.f32 %v879, %v913
    %915 = vmatmul.f32.gmra.mxu0 %v814
    %v916 = vpop.f32.mrf.mxu0
    %v917 = vadd.f32 %v879, %v916
    %918 = vmatmul.f32.gmra.mxu0 %v817
    %v919 = vpop.f32.mrf.mxu0
    %v920 = vadd.f32 %v879, %v919
    %921 = vmatmul.f32.gmra.mxu0 %v820
    %v922 = vpop.f32.mrf.mxu0
    %v923 = vadd.f32 %v879, %v922
    %924 = vmatmul.f32.gmra.mxu0 %v823
    %v925 = vpop.f32.mrf.mxu0
    %v926 = vadd.f32 %v879, %v925
    %927 = vmatmul.f32.gmra.mxu0 %v826
    %v928 = vpop.f32.mrf.mxu0
    %v929 = vadd.f32 %v879, %v928
    %930 = vmatmul.f32.gmra.mxu0 %v829
    %v931 = vpop.f32.mrf.mxu0
    %v932 = vadd.f32 %v879, %v931
    %933 = vmatmul.f32.gmra.mxu0 %v832
    %v934 = vpop.f32.mrf.mxu0
    %v935 = vadd.f32 %v879, %v934
    %936 = vmatmul.f32.gmra.mxu0 %v835
    %v937 = vpop.f32.mrf.mxu0
    %v938 = vadd.f32 %v879, %v937
    %939 = vmatmul.f32.gmra.mxu0 %v838
    %v940 = vpop.f32.mrf.mxu0
    %v941 = vadd.f32 %v879, %v940
    %942 = vmatmul.f32.gmra.mxu0 %v841
    %v943 = vpop.f32.mrf.mxu0
    %v944 = vadd.f32 %v879, %v943
    %945 = vdwg.mxu0
    %946 = vmatpush.msra.mxu0 %v875
    %947 = vmatpush.msra.mxu0 %v874
    %948 = vmatpush.msra.mxu0 %v873
    %949 = vmatpush.msra.mxu0 %v872
    %950 = vmatpush.msra.mxu0 %v871
    %951 = vmatpush.msra.mxu0 %v870
    %952 = vmatpush.msra.mxu0 %v869
    %953 = vmatpush.msra.mxu0 %v868
    %954 = vmatpush.msra.mxu0 %v867
    %955 = vmatpush.msra.mxu0 %v866
    %956 = vmatpush.msra.mxu0 %v865
    %957 = vmatpush.msra.mxu0 %v864
    %958 = vmatpush.msra.mxu0 %v863
    %959 = vmatpush.msra.mxu0 %v862
    %960 = vmatpush.msra.mxu0 %v861
    %961 = vmatpush.msra.mxu0 %v860
    %962 = vmatmul.f32.gmra.mxu0 %v746
    %v963 = vpop.f32.mrf.mxu0
    %v964 = vadd.f32 %v899, %v963
    %965 = vmatmul.f32.gmra.mxu0 %v747
    %v966 = vpop.f32.mrf.mxu0
    %v967 = vadd.f32 %v902, %v966
    %968 = vmatmul.f32.gmra.mxu0 %v748
    %v969 = vpop.f32.mrf.mxu0
    %v970 = vadd.f32 %v905, %v969
    %971 = vmatmul.f32.gmra.mxu0 %v749
    %v972 = vpop.f32.mrf.mxu0
    %v973 = vadd.f32 %v908, %v972
    %974 = vmatmul.f32.gmra.mxu0 %v750
    %v975 = vpop.f32.mrf.mxu0
    %v976 = vadd.f32 %v911, %v975
    %977 = vmatmul.f32.gmra.mxu0 %v751
    %v978 = vpop.f32.mrf.mxu0
    %v979 = vadd.f32 %v914, %v978
    %980 = vmatmul.f32.gmra.mxu0 %v752
    %v981 = vpop.f32.mrf.mxu0
    %v982 = vadd.f32 %v917, %v981
    %983 = vmatmul.f32.gmra.mxu0 %v753
    %v984 = vpop.f32.mrf.mxu0
    %v985 = vadd.f32 %v920, %v984
    %986 = vmatmul.f32.gmra.mxu0 %v754
    %v987 = vpop.f32.mrf.mxu0
    %v988 = vadd.f32 %v923, %v987
    %989 = vmatmul.f32.gmra.mxu0 %v755
    %v990 = vpop.f32.mrf.mxu0
    %v991 = vadd.f32 %v926, %v990
    %992 = vmatmul.f32.gmra.mxu0 %v756
    %v993 = vpop.f32.mrf.mxu0
    %v994 = vadd.f32 %v929, %v993
    %995 = vmatmul.f32.gmra.mxu0 %v757
    %v996 = vpop.f32.mrf.mxu0
    %v997 = vadd.f32 %v932, %v996
    %998 = vmatmul.f32.gmra.mxu0 %v758
    %v999 = vpop.f32.mrf.mxu0
    %v1000 = vadd.f32 %v935, %v999
    %1001 = vmatmul.f32.gmra.mxu0 %v759
    %v1002 = vpop.f32.mrf.mxu0
    %v1003 = vadd.f32 %v938, %v1002
    %1004 = vmatmul.f32.gmra.mxu0 %v760
    %v1005 = vpop.f32.mrf.mxu0
    %v1006 = vadd.f32 %v941, %v1005
    %1007 = vmatmul.f32.gmra.mxu0 %v761
    %v1008 = vpop.f32.mrf.mxu0
    %v1009 = vadd.f32 %v944, %v1008
    %1010 = vdwg.mxu0
    %s1011 = sld [smem:[#allocation11 + $0x1]]
    %vm1012 = vcmp.gt.f32.partialorder %v964, 0.0
    %vm1013 = vcmp.gt.f32.partialorder %v967, 0.0
    %vm1014 = vcmp.gt.f32.partialorder %v970, 0.0
    %vm1015 = vcmp.gt.f32.partialorder %v973, 0.0
    %vm1016 = vcmp.gt.f32.partialorder %v976, 0.0
    %vm1017 = vcmp.gt.f32.partialorder %v979, 0.0
    %vm1018 = vcmp.gt.f32.partialorder %v982, 0.0
    %vm1019 = vcmp.gt.f32.partialorder %v985, 0.0
    %vm1020 = vcmp.gt.f32.partialorder %v988, 0.0
    %vm1021 = vcmp.gt.f32.partialorder %v991, 0.0
    %vm1022 = vcmp.gt.f32.partialorder %v994, 0.0
    %vm1023 = vcmp.gt.f32.partialorder %v997, 0.0
    %vm1024 = vcmp.gt.f32.partialorder %v1000, 0.0
    %vm1025 = vcmp.gt.f32.partialorder %v1003, 0.0
    %vm1026 = vcmp.gt.f32.partialorder %v1006, 0.0
    %vm1027 = vcmp.gt.f32.partialorder %v1009, 0.0
    %v1028 = vstv %s1011
    %v1029 = vmul.f32 %v1028, %v964
    %v1030 = vmul.f32 %v1028, %v967
    %v1031 = vmul.f32 %v1028, %v970
    %v1032 = vmul.f32 %v1028, %v973
    %v1033 = vmul.f32 %v1028, %v976
    %v1034 = vmul.f32 %v1028, %v979
    %v1035 = vmul.f32 %v1028, %v982
    %v1036 = vmul.f32 %v1028, %v985
    %v1037 = vmul.f32 %v1028, %v988
    %v1038 = vmul.f32 %v1028, %v991
    %v1039 = vmul.f32 %v1028, %v994
    %v1040 = vmul.f32 %v1028, %v997
    %v1041 = vmul.f32 %v1028, %v1000
    %v1042 = vmul.f32 %v1028, %v1003
    %v1043 = vmul.f32 %v1028, %v1006
    %v1044 = vmul.f32 %v1028, %v1009
    %v1045 = vsel %vm1012, %v964, %v1029
    %v1046 = vsel %vm1013, %v967, %v1030
    %v1047 = vsel %vm1014, %v970, %v1031
    %v1048 = vsel %vm1015, %v973, %v1032
    %v1049 = vsel %vm1016, %v976, %v1033
    %v1050 = vsel %vm1017, %v979, %v1034
    %v1051 = vsel %vm1018, %v982, %v1035
    %v1052 = vsel %vm1019, %v985, %v1036
    %v1053 = vsel %vm1020, %v988, %v1037
    %v1054 = vsel %vm1021, %v991, %v1038
    %v1055 = vsel %vm1022, %v994, %v1039
    %v1056 = vsel %vm1023, %v997, %v1040
    %v1057 = vsel %vm1024, %v1000, %v1041
    %v1058 = vsel %vm1025, %v1003, %v1042
    %v1059 = vsel %vm1026, %v1006, %v1043
    %v1060 = vsel %vm1027, %v1009, %v1044
    %s1061 = scalar_lea.vmem [#allocation12], 128
    %1062 = vst [vmem:[%s1061] sm:$0xff] %v1045
    %1063 = vst [vmem:[%s1061 + $0x8] sm:$0xff] %v1046
    %1064 = vst [vmem:[%s1061 + $0x10] sm:$0xff] %v1047
    %1065 = vst [vmem:[%s1061 + $0x18] sm:$0xff] %v1048
    %1066 = vst [vmem:[%s1061 + $0x20] sm:$0xff] %v1049
    %1067 = vst [vmem:[%s1061 + $0x28] sm:$0xff] %v1050
    %1068 = vst [vmem:[%s1061 + $0x30] sm:$0xff] %v1051
    %1069 = vst [vmem:[%s1061 + $0x38] sm:$0xff] %v1052
    %1070 = vst [vmem:[%s1061 + $0x40] sm:$0xff] %v1053
    %1071 = vst [vmem:[%s1061 + $0x48] sm:$0xff] %v1054
    %1072 = vst [vmem:[%s1061 + $0x50] sm:$0xff] %v1055
    %1073 = vst [vmem:[%s1061 + $0x58] sm:$0xff] %v1056
    %1074 = vst [vmem:[%s1061 + $0x60] sm:$0xff] %v1057
    %1075 = vst [vmem:[%s1061 + $0x68] sm:$0xff] %v1058
    %1076 = vst [vmem:[%s1061 + $0x70] sm:$0xff] %v1059
    %1077 = vst [vmem:[%s1061 + $0x78] sm:$0xff] %v1060
    %1078 = vmatpush.msra.mxu0 %v1060
    %1079 = vmatpush.msra.mxu0 %v1059
    %1080 = vmatpush.msra.mxu0 %v1058
    %1081 = vmatpush.msra.mxu0 %v1057
    %1082 = vmatpush.msra.mxu0 %v1056
    %1083 = vmatpush.msra.mxu0 %v1055
    %1084 = vmatpush.msra.mxu0 %v1054
    %1085 = vmatpush.msra.mxu0 %v1053
    %1086 = vmatpush.msra.mxu0 %v1052
    %1087 = vmatpush.msra.mxu0 %v1051
    %1088 = vmatpush.msra.mxu0 %v1050
    %1089 = vmatpush.msra.mxu0 %v1049
    %1090 = vmatpush.msra.mxu0 %v1048
    %1091 = vmatpush.msra.mxu0 %v1047
    %1092 = vmatpush.msra.mxu0 %v1046
    %1093 = vmatpush.msra.mxu0 %v1045
    %1094 = vmatmul.f32.gmra.mxu0 %v449
    %v1095 = vpop.f32.mrf.mxu0
    %v1096 = vadd.f32 0.0, %v1095
    %1097 = vmatmul.f32.gmra.mxu0 %v450
    %v1098 = vpop.f32.mrf.mxu0
    %v1099 = vadd.f32 0.0, %v1098
    %1100 = vmatmul.f32.gmra.mxu0 %v451
    %v1101 = vpop.f32.mrf.mxu0
    %v1102 = vadd.f32 0.0, %v1101
    %1103 = vmatmul.f32.gmra.mxu0 %v452
    %v1104 = vpop.f32.mrf.mxu0
    %v1105 = vadd.f32 0.0, %v1104
    %1106 = vmatmul.f32.gmra.mxu0 %v453
    %v1107 = vpop.f32.mrf.mxu0
    %v1108 = vadd.f32 0.0, %v1107
    %1109 = vmatmul.f32.gmra.mxu0 %v454
    %v1110 = vpop.f32.mrf.mxu0
    %v1111 = vadd.f32 0.0, %v1110
    %1112 = vmatmul.f32.gmra.mxu0 %v455
    %v1113 = vpop.f32.mrf.mxu0
    %v1114 = vadd.f32 0.0, %v1113
    %1115 = vmatmul.f32.gmra.mxu0 %v456
    %v1116 = vpop.f32.mrf.mxu0
    %v1117 = vadd.f32 0.0, %v1116
    %1118 = vmatmul.f32.gmra.mxu0 %v457
    %v1119 = vpop.f32.mrf.mxu0
    %v1120 = vadd.f32 0.0, %v1119
    %1121 = vmatmul.f32.gmra.mxu0 %v458
    %v1122 = vpop.f32.mrf.mxu0
    %v1123 = vadd.f32 0.0, %v1122
    %1124 = vmatmul.f32.gmra.mxu0 %v459
    %v1125 = vpop.f32.mrf.mxu0
    %v1126 = vadd.f32 0.0, %v1125
    %1127 = vmatmul.f32.gmra.mxu0 %v460
    %v1128 = vpop.f32.mrf.mxu0
    %v1129 = vadd.f32 0.0, %v1128
    %1130 = vmatmul.f32.gmra.mxu0 %v461
    %v1131 = vpop.f32.mrf.mxu0
    %v1132 = vadd.f32 0.0, %v1131
    %1133 = vmatmul.f32.gmra.mxu0 %v462
    %v1134 = vpop.f32.mrf.mxu0
    %v1135 = vadd.f32 0.0, %v1134
    %1136 = vmatmul.f32.gmra.mxu0 %v463
    %v1137 = vpop.f32.mrf.mxu0
    %v1138 = vadd.f32 0.0, %v1137
    %1139 = vmatmul.f32.gmra.mxu0 %v464
    %v1140 = vpop.f32.mrf.mxu0
    %v1141 = vadd.f32 0.0, %v1140
    %1142 = vdwg.mxu0
    %s1143 = scalar_lea.vmem [#allocation8], 512
    %v1144 = vld [vmem:[%s1143] sm:$0xff]
    %v1145 = vld [vmem:[%s1143 + $0x8] sm:$0xff]
    %v1146 = vld [vmem:[%s1143 + $0x10] sm:$0xff]
    %v1147 = vld [vmem:[%s1143 + $0x18] sm:$0xff]
    %v1148 = vld [vmem:[%s1143 + $0x20] sm:$0xff]
    %v1149 = vld [vmem:[%s1143 + $0x28] sm:$0xff]
    %v1150 = vld [vmem:[%s1143 + $0x30] sm:$0xff]
    %v1151 = vld [vmem:[%s1143 + $0x38] sm:$0xff]
    %v1152 = vld [vmem:[%s1143 + $0x40] sm:$0xff]
    %v1153 = vld [vmem:[%s1143 + $0x48] sm:$0xff]
    %v1154 = vld [vmem:[%s1143 + $0x50] sm:$0xff]
    %v1155 = vld [vmem:[%s1143 + $0x58] sm:$0xff]
    %v1156 = vld [vmem:[%s1143 + $0x60] sm:$0xff]
    %v1157 = vld [vmem:[%s1143 + $0x68] sm:$0xff]
    %v1158 = vld [vmem:[%s1143 + $0x70] sm:$0xff]
    %v1159 = vld [vmem:[%s1143 + $0x78] sm:$0xff]
    %v1160 = vld [vmem:[%s1143 + $0x80] sm:$0xff]
    %v1161 = vld [vmem:[%s1143 + $0x88] sm:$0xff]
    %v1162 = vld [vmem:[%s1143 + $0x90] sm:$0xff]
    %v1163 = vld [vmem:[%s1143 + $0x98] sm:$0xff]
    %v1164 = vld [vmem:[%s1143 + $0xa0] sm:$0xff]
    %v1165 = vld [vmem:[%s1143 + $0xa8] sm:$0xff]
    %v1166 = vld [vmem:[%s1143 + $0xb0] sm:$0xff]
    %v1167 = vld [vmem:[%s1143 + $0xb8] sm:$0xff]
    %v1168 = vld [vmem:[%s1143 + $0xc0] sm:$0xff]
    %v1169 = vld [vmem:[%s1143 + $0xc8] sm:$0xff]
    %v1170 = vld [vmem:[%s1143 + $0xd0] sm:$0xff]
    %v1171 = vld [vmem:[%s1143 + $0xd8] sm:$0xff]
    %v1172 = vld [vmem:[%s1143 + $0xe0] sm:$0xff]
    %v1173 = vld [vmem:[%s1143 + $0xe8] sm:$0xff]
    %v1174 = vld [vmem:[%s1143 + $0xf0] sm:$0xff]
    %v1175 = vld [vmem:[%s1143 + $0xf8] sm:$0xff]
    %s1176 = scalar_lea.vmem [#allocation9], 2
    %v1177 = vld [vmem:[%s1176] sm:$0x1]
    %v1179 = vperm.slane %v1177, 0
    %1181 = vmatpush.msra.mxu0 %v1159
    %1182 = vmatpush.msra.mxu0 %v1158
    %1183 = vmatpush.msra.mxu0 %v1157
    %1184 = vmatpush.msra.mxu0 %v1156
    %1185 = vmatpush.msra.mxu0 %v1155
    %1186 = vmatpush.msra.mxu0 %v1154
    %1187 = vmatpush.msra.mxu0 %v1153
    %1188 = vmatpush.msra.mxu0 %v1152
    %1189 = vmatpush.msra.mxu0 %v1151
    %1190 = vmatpush.msra.mxu0 %v1150
    %1191 = vmatpush.msra.mxu0 %v1149
    %1192 = vmatpush.msra.mxu0 %v1148
    %1193 = vmatpush.msra.mxu0 %v1147
    %1194 = vmatpush.msra.mxu0 %v1146
    %1195 = vmatpush.msra.mxu0 %v1145
    %1196 = vmatpush.msra.mxu0 %v1144
    %1197 = vmatmul.f32.gmra.mxu0 %v1096
    %v1198 = vpop.f32.mrf.mxu0
    %v1199 = vadd.f32 %v1179, %v1198
    %1200 = vmatmul.f32.gmra.mxu0 %v1099
    %v1201 = vpop.f32.mrf.mxu0
    %v1202 = vadd.f32 %v1179, %v1201
    %1203 = vmatmul.f32.gmra.mxu0 %v1102
    %v1204 = vpop.f32.mrf.mxu0
    %v1205 = vadd.f32 %v1179, %v1204
    %1206 = vmatmul.f32.gmra.mxu0 %v1105
    %v1207 = vpop.f32.mrf.mxu0
    %v1208 = vadd.f32 %v1179, %v1207
    %1209 = vmatmul.f32.gmra.mxu0 %v1108
    %v1210 = vpop.f32.mrf.mxu0
    %v1211 = vadd.f32 %v1179, %v1210
    %1212 = vmatmul.f32.gmra.mxu0 %v1111
    %v1213 = vpop.f32.mrf.mxu0
    %v1214 = vadd.f32 %v1179, %v1213
    %1215 = vmatmul.f32.gmra.mxu0 %v1114
    %v1216 = vpop.f32.mrf.mxu0
    %v1217 = vadd.f32 %v1179, %v1216
    %1218 = vmatmul.f32.gmra.mxu0 %v1117
    %v1219 = vpop.f32.mrf.mxu0
    %v1220 = vadd.f32 %v1179, %v1219
    %1221 = vmatmul.f32.gmra.mxu0 %v1120
    %v1222 = vpop.f32.mrf.mxu0
    %v1223 = vadd.f32 %v1179, %v1222
    %1224 = vmatmul.f32.gmra.mxu0 %v1123
    %v1225 = vpop.f32.mrf.mxu0
    %v1226 = vadd.f32 %v1179, %v1225
    %1227 = vmatmul.f32.gmra.mxu0 %v1126
    %v1228 = vpop.f32.mrf.mxu0
    %v1229 = vadd.f32 %v1179, %v1228
    %1230 = vmatmul.f32.gmra.mxu0 %v1129
    %v1231 = vpop.f32.mrf.mxu0
    %v1232 = vadd.f32 %v1179, %v1231
    %1233 = vmatmul.f32.gmra.mxu0 %v1132
    %v1234 = vpop.f32.mrf.mxu0
    %v1235 = vadd.f32 %v1179, %v1234
    %1236 = vmatmul.f32.gmra.mxu0 %v1135
    %v1237 = vpop.f32.mrf.mxu0
    %v1238 = vadd.f32 %v1179, %v1237
    %1239 = vmatmul.f32.gmra.mxu0 %v1138
    %v1240 = vpop.f32.mrf.mxu0
    %v1241 = vadd.f32 %v1179, %v1240
    %1242 = vmatmul.f32.gmra.mxu0 %v1141
    %v1243 = vpop.f32.mrf.mxu0
    %v1244 = vadd.f32 %v1179, %v1243
    %1245 = vdwg.mxu0
    %1246 = vmatpush.msra.mxu0 %v1175
    %1247 = vmatpush.msra.mxu0 %v1174
    %1248 = vmatpush.msra.mxu0 %v1173
    %1249 = vmatpush.msra.mxu0 %v1172
    %1250 = vmatpush.msra.mxu0 %v1171
    %1251 = vmatpush.msra.mxu0 %v1170
    %1252 = vmatpush.msra.mxu0 %v1169
    %1253 = vmatpush.msra.mxu0 %v1168
    %1254 = vmatpush.msra.mxu0 %v1167
    %1255 = vmatpush.msra.mxu0 %v1166
    %1256 = vmatpush.msra.mxu0 %v1165
    %1257 = vmatpush.msra.mxu0 %v1164
    %1258 = vmatpush.msra.mxu0 %v1163
    %1259 = vmatpush.msra.mxu0 %v1162
    %1260 = vmatpush.msra.mxu0 %v1161
    %1261 = vmatpush.msra.mxu0 %v1160
    %1262 = vmatmul.f32.gmra.mxu0 %v1045
    %v1263 = vpop.f32.mrf.mxu0
    %v1264 = vadd.f32 %v1199, %v1263
    %1265 = vmatmul.f32.gmra.mxu0 %v1046
    %v1266 = vpop.f32.mrf.mxu0
    %v1267 = vadd.f32 %v1202, %v1266
    %1268 = vmatmul.f32.gmra.mxu0 %v1047
    %v1269 = vpop.f32.mrf.mxu0
    %v1270 = vadd.f32 %v1205, %v1269
    %1271 = vmatmul.f32.gmra.mxu0 %v1048
    %v1272 = vpop.f32.mrf.mxu0
    %v1273 = vadd.f32 %v1208, %v1272
    %1274 = vmatmul.f32.gmra.mxu0 %v1049
    %v1275 = vpop.f32.mrf.mxu0
    %v1276 = vadd.f32 %v1211, %v1275
    %1277 = vmatmul.f32.gmra.mxu0 %v1050
    %v1278 = vpop.f32.mrf.mxu0
    %v1279 = vadd.f32 %v1214, %v1278
    %1280 = vmatmul.f32.gmra.mxu0 %v1051
    %v1281 = vpop.f32.mrf.mxu0
    %v1282 = vadd.f32 %v1217, %v1281
    %1283 = vmatmul.f32.gmra.mxu0 %v1052
    %v1284 = vpop.f32.mrf.mxu0
    %v1285 = vadd.f32 %v1220, %v1284
    %1286 = vmatmul.f32.gmra.mxu0 %v1053
    %v1287 = vpop.f32.mrf.mxu0
    %v1288 = vadd.f32 %v1223, %v1287
    %1289 = vmatmul.f32.gmra.mxu0 %v1054
    %v1290 = vpop.f32.mrf.mxu0
    %v1291 = vadd.f32 %v1226, %v1290
    %1292 = vmatmul.f32.gmra.mxu0 %v1055
    %v1293 = vpop.f32.mrf.mxu0
    %v1294 = vadd.f32 %v1229, %v1293
    %1295 = vmatmul.f32.gmra.mxu0 %v1056
    %v1296 = vpop.f32.mrf.mxu0
    %v1297 = vadd.f32 %v1232, %v1296
    %1298 = vmatmul.f32.gmra.mxu0 %v1057
    %v1299 = vpop.f32.mrf.mxu0
    %v1300 = vadd.f32 %v1235, %v1299
    %1301 = vmatmul.f32.gmra.mxu0 %v1058
    %v1302 = vpop.f32.mrf.mxu0
    %v1303 = vadd.f32 %v1238, %v1302
    %1304 = vmatmul.f32.gmra.mxu0 %v1059
    %v1305 = vpop.f32.mrf.mxu0
    %v1306 = vadd.f32 %v1241, %v1305
    %1307 = vmatmul.f32.gmra.mxu0 %v1060
    %v1308 = vpop.f32.mrf.mxu0
    %v1309 = vadd.f32 %v1244, %v1308
    %1310 = vdwg.mxu0
    %s1311 = scalar_lea.vmem [#allocation12], 256
    %1312 = vst [vmem:[%s1311] sm:$0xff] %v1264
    %1313 = vst [vmem:[%s1311 + $0x8] sm:$0xff] %v1267
    %1314 = vst [vmem:[%s1311 + $0x10] sm:$0xff] %v1270
    %1315 = vst [vmem:[%s1311 + $0x18] sm:$0xff] %v1273
    %1316 = vst [vmem:[%s1311 + $0x20] sm:$0xff] %v1276
    %1317 = vst [vmem:[%s1311 + $0x28] sm:$0xff] %v1279
    %1318 = vst [vmem:[%s1311 + $0x30] sm:$0xff] %v1282
    %1319 = vst [vmem:[%s1311 + $0x38] sm:$0xff] %v1285
    %1320 = vst [vmem:[%s1311 + $0x40] sm:$0xff] %v1288
    %1321 = vst [vmem:[%s1311 + $0x48] sm:$0xff] %v1291
    %1322 = vst [vmem:[%s1311 + $0x50] sm:$0xff] %v1294
    %1323 = vst [vmem:[%s1311 + $0x58] sm:$0xff] %v1297
    %1324 = vst [vmem:[%s1311 + $0x60] sm:$0xff] %v1300
    %1325 = vst [vmem:[%s1311 + $0x68] sm:$0xff] %v1303
    %1326 = vst [vmem:[%s1311 + $0x70] sm:$0xff] %v1306
    %1327 = vst [vmem:[%s1311 + $0x78] sm:$0xff] %v1309
    // Predicated region
    $region42: #{tpu_custom_call.1} parent=1 // pred_check
      _
    $region43: #{tpu_custom_call.1} parent=1 // pred_check_branch
      %1329 = sbr.rel (0) target = $region45
    $region44: #{tpu_custom_call.1} parent=1 // pred_region
      %1331 = vsyncadd [#allocation4], 0
      %s1332 = sshll.u32 [#allocation12], 4
      %s1333 = int_to_ptr.vmem [resolvable:$true] %s1332
      %s1334 = sshll.u32 %s5, 4
      %s1335 = int_to_ptr.hbm [resolvable:$true] %s1334
      %1340 = dma.vmem_to_hbm [thread:$0]  %s1333, 6144, %s1335, [#allocation4], 128, 128, 8
    $region45: #{tpu_custom_call.1} parent=1 // pred_fallthru
      _
    // Predicated region
    $region46: #{tpu_custom_call.1} parent=1 // pred_check
      _
    $region47: #{tpu_custom_call.1} parent=1 // pred_check_branch
      %1342 = sbr.rel (0) target = $region49
    $region48: #{tpu_custom_call.1} parent=1 // pred_region
      %1344 = dma.done [#allocation4], 6144
    $region49: #{tpu_custom_call.1} parent=1 // pred_fallthru
      _
    %1345 = vsyncpa [#allocation3], 1
    %1346 = vsyncpa [#allocation7], 1
    %1347 = vsyncpa [#allocation10], 1
    %1348 = vsyncpa [#allocation4], 1
    %1349 = vsyncpa [#allocation5], 1

</llo_original>
